<compile_context>
chip_gen: v5e
topology: v5e:2x2
jax: 0.10.0
libtpu: 0.0.40
codegen_flags: <defaults>
</compile_context>

<pallas_src>
import functools
import math

import jax
import jax.numpy as jnp
from jax import lax
from jax.experimental import pallas as pl
from jax.experimental.pallas import tpu as pltpu

_BF16 = jnp.bfloat16
_NEG_INF = -1e9


# ----------------------------------------------------------------------------
# In-kernel helpers (traced inside Pallas kernels)
# ----------------------------------------------------------------------------

def _mm(a, w, b=None):
    """MXU matmul: bf16 operands, f32 accumulation; contracts a's last dim with w's first."""
    acc = lax.dot_general(
        a.astype(_BF16), w.astype(_BF16),
        dimension_numbers=(((a.ndim - 1,), (0,)), ((), ())),
        preferred_element_type=jnp.float32)
    if b is not None:
        acc = acc + b
    return acc


def _ln(x, g, b, eps=1e-5):
    m = jnp.mean(x, axis=-1, keepdims=True)
    c = x - m
    v = jnp.mean(c * c, axis=-1, keepdims=True)
    return c * lax.rsqrt(v + eps) * g + b


# ----------------------------------------------------------------------------
# Kernel 1: fused 2-layer GCN + s_n gather   (image encoder)
# ----------------------------------------------------------------------------

def _gcn_gather_kernel(s_n_ref, adj_ref, x_ref, w1_ref, b1_ref, w2_ref, b2_ref,
                       o_ref, *, batch):
    adj = adj_ref[...]                                            # (N, N) bf16
    xw1 = _mm(x_ref[...], w1_ref[...])                            # (N, H) f32
    h = _mm(adj, xw1) + b1_ref[...]                               # adj @ (x W1) + b1
    h = jnp.maximum(h, 0.0)
    xw2 = _mm(h, w2_ref[...])                                     # (N, E) f32
    nf = _mm(adj, xw2) + b2_ref[...]                              # node features (N, E)

    # in-kernel gather of the selected nodes (mask-reduce; batch is tiny & static)
    node_ids = lax.broadcasted_iota(jnp.int32, (nf.shape[0], 1), 0)
    for b in range(batch):
        sel = (node_ids == s_n_ref[b]).astype(jnp.float32)
        o_ref[pl.ds(b, 1), :] = jnp.sum(nf * sel, axis=0, keepdims=True).astype(o_ref.dtype)


def gcn_image_encoder(p, s_n, x, adj):
    N, F = x.shape
    H = p["gnn_w1"].shape[1]
    E = p["gnn_w2"].shape[1]
    batch = s_n.shape[0]
    return pl.pallas_call(
        functools.partial(_gcn_gather_kernel, batch=batch),
        out_shape=jax.ShapeDtypeStruct((batch, E), jnp.float32),
        grid=(1,),
        in_specs=[
            pl.BlockSpec(memory_space=pltpu.MemorySpace.SMEM),    # s_n (int32 scalars)
            pl.BlockSpec((N, N), lambda i: (0, 0)),
            pl.BlockSpec((N, F), lambda i: (0, 0)),
            pl.BlockSpec((F, H), lambda i: (0, 0)),
            pl.BlockSpec((1, H), lambda i: (0, 0)),
            pl.BlockSpec((H, E), lambda i: (0, 0)),
            pl.BlockSpec((1, E), lambda i: (0, 0)),
        ],
        out_specs=pl.BlockSpec((batch, E), lambda i: (0, 0)),
    )(s_n.astype(jnp.int32),
      adj.astype(_BF16), x.astype(_BF16),
      p["gnn_w1"].astype(_BF16), p["gnn_b1"].reshape(1, H),
      p["gnn_w2"].astype(_BF16), p["gnn_b2"].reshape(1, E))


# ----------------------------------------------------------------------------
# Kernel 2: fully fused text-encoder block, gridded over n_cls ("parallel")
# ----------------------------------------------------------------------------

def _text_block_kernel(eot_ref, prompts_ref, pos_ref,
                       ln1_g_ref, ln1_b_ref, wqkv_ref, bqkv_ref, wproj_ref, bproj_ref,
                       ln2_g_ref, ln2_b_ref, wfc1_ref, bfc1_ref, wfc2_ref, bfc2_ref,
                       lnf_g_ref, lnf_b_ref, wtp_ref,
                       o_ref, attn_scr, *, n_heads, scale):
    i = pl.program_id(0)
    L, D = pos_ref.shape
    Dh = D // n_heads

    # residual stream stays f32
    x = prompts_ref[...].astype(jnp.float32) + pos_ref[...]      # (L, D)

    # --- residual attention block (pre-LN, CLIP style) ---
    y = _ln(x, ln1_g_ref[...], ln1_b_ref[...])
    qkv = _mm(y, wqkv_ref[...], bqkv_ref[...])                   # (L, 3D) f32

    # causal mask built in-kernel (no HBM mask input)
    row = lax.broadcasted_iota(jnp.int32, (L, L), 0)
    col = lax.broadcasted_iota(jnp.int32, (L, L), 1)
    causal = jnp.where(row >= col, 0.0, _NEG_INF).astype(jnp.float32)

    # all heads handled inside the single grid step (static unrolled loop)
    for h in range(n_heads):
        qh = qkv[:, h * Dh:(h + 1) * Dh]
        kh = qkv[:, D + h * Dh:D + (h + 1) * Dh]
        vh = qkv[:, 2 * D + h * Dh:2 * D + (h + 1) * Dh]
        s = lax.dot_general(qh.astype(_BF16), kh.astype(_BF16),
                            dimension_numbers=(((1,), (1,)), ((), ())),
                            preferred_element_type=jnp.float32) * scale + causal
        s = s - jnp.max(s, axis=-1, keepdims=True)
        pr = jnp.exp(s)
        pr = pr * pl.reciprocal(jnp.sum(pr, axis=-1, keepdims=True), approx=True)
        oh = lax.dot_general(pr.astype(_BF16), vh.astype(_BF16),
                             dimension_numbers=(((1,), (0,)), ((), ())),
                             preferred_element_type=jnp.float32)
        attn_scr[:, h * Dh:(h + 1) * Dh] = oh
    x = x + _mm(attn_scr[...], wproj_ref[...], bproj_ref[...])

    # --- MLP with QuickGELU ---
    y = _ln(x, ln2_g_ref[...], ln2_b_ref[...])
    y = _mm(y, wfc1_ref[...], bfc1_ref[...])
    y = y * jax.nn.sigmoid(1.702 * y)
    x = x + _mm(y, wfc2_ref[...], bfc2_ref[...])

    # --- ln_final + EOT-token selection + text projection (no bias) ---
    xf = _ln(x, lnf_g_ref[...], lnf_b_ref[...])
    eot = eot_ref[i]
    rows = lax.broadcasted_iota(jnp.int32, (L, 1), 0)
    sel = (rows == eot).astype(jnp.float32)
    x_eot = jnp.sum(xf * sel, axis=0, keepdims=True)             # (1, D)
    o_ref[...] = _mm(x_eot, wtp_ref[...]).astype(o_ref.dtype)    # (1, E)


def text_encoder(p, prompts, tokenized_prompts, n_heads):
    n_cls, L, D = prompts.shape
    E = p["text_proj"].shape[1]
    scale = 1.0 / math.sqrt(D // n_heads)
    eot = jnp.argmax(tokenized_prompts, axis=-1).astype(jnp.int32)   # (n_cls,) glue

    def vec(v):
        return v.reshape(1, -1)

    args = (
        eot,
        prompts,
        p["pos_emb"],
        vec(p["ln1_g"]), vec(p["ln1_b"]),
        p["w_qkv"].astype(_BF16), vec(p["b_qkv"]),
        p["w_proj"].astype(_BF16), vec(p["b_proj"]),
        vec(p["ln2_g"]), vec(p["ln2_b"]),
        p["w_fc1"].astype(_BF16), vec(p["b_fc1"]),
        p["w_fc2"].astype(_BF16), vec(p["b_fc2"]),
        vec(p["lnf_g"]), vec(p["lnf_b"]),
        p["text_proj"].astype(_BF16),
    )

    in_specs = [
        pl.BlockSpec(memory_space=pltpu.MemorySpace.SMEM),          # eot indices
        pl.BlockSpec((None, L, D), lambda i: (i, 0, 0)),            # per-class prompt (squeezed)
    ]
    # all weights / params: full-array blocks, constant index map (fetched once, VMEM-resident)
    in_specs += [pl.BlockSpec(a.shape, lambda i: (0, 0)) for a in args[2:]]

    out = pl.pallas_call(
        functools.partial(_text_block_kernel, n_heads=n_heads, scale=scale),
        out_shape=jax.ShapeDtypeStruct((n_cls, 1, E), jnp.float32),
        grid=(n_cls,),
        in_specs=in_specs,
        out_specs=pl.BlockSpec((None, 1, E), lambda i: (i, 0, 0)),
        scratch_shapes=[pltpu.VMEM((L, D), jnp.float32)],
        compiler_params=pltpu.CompilerParams(
            dimension_semantics=("parallel",)),                      # classes are independent
    )(*args)
    return out.reshape(n_cls, E)


# ----------------------------------------------------------------------------
# Kernel 3: fused normalize + scaled cosine-similarity logits
# ----------------------------------------------------------------------------

def _logits_kernel(img_ref, txt_ref, scale_ref, o_ref):
    img = img_ref[...].astype(jnp.float32)
    txt = txt_ref[...].astype(jnp.float32)
    img = img * lax.rsqrt(jnp.sum(img * img, axis=-1, keepdims=True))
    txt = txt * lax.rsqrt(jnp.sum(txt * txt, axis=-1, keepdims=True))
    logits = lax.dot_general(img.astype(_BF16), txt.astype(_BF16),
                             dimension_numbers=(((1,), (1,)), ((), ())),
                             preferred_element_type=jnp.float32)
    o_ref[...] = (jnp.exp(scale_ref[0]) * logits).astype(o_ref.dtype)


def clip_logits(image_features, text_features, logit_scale):
    B, D = image_features.shape
    C, D2 = text_features.shape
    assert D == D2
    return pl.pallas_call(
        _logits_kernel,
        out_shape=jax.ShapeDtypeStruct((B, C), jnp.float32),
        grid=(1,),
        in_specs=[
            pl.BlockSpec((B, D), lambda i: (0, 0)),
            pl.BlockSpec((C, D), lambda i: (0, 0)),
            pl.BlockSpec(memory_space=pltpu.MemorySpace.SMEM),
        ],
        out_specs=pl.BlockSpec((B, C), lambda i: (0, 0)),
    )(image_features, text_features, logit_scale)


# ----------------------------------------------------------------------------
# Model forward (glue around the 3 fused Pallas kernels)
# ----------------------------------------------------------------------------

def custom_clip_forward(p, s_n, x, adj, n_heads):
    # image encoder: fused 2-layer GCN with in-kernel s_n gather
    image_features = gcn_image_encoder(p, s_n, x, adj)               # (batch, embed_dim)

    # prompt learner, class_token_position == 'end'   (concat/broadcast = XLA glue)
    ctx = p["ctx"]
    n_cls = p["token_prefix"].shape[0]
    ctx = jnp.broadcast_to(ctx[None], (n_cls,) + ctx.shape)
    prompts = jnp.concatenate([p["token_prefix"], ctx, p["token_suffix"]], axis=1)

    # text encoder: one fused kernel over n_cls
    text_features = text_encoder(p, prompts, p["tokenized_prompts"], n_heads)

    # normalize + scaled cosine-similarity logits
    return clip_logits(image_features, text_features, p["logit_scale"])


# ----------------------------------------------------------------------------
# Deterministic parameter construction
# ----------------------------------------------------------------------------

def make_params(key, *, n_cls, n_ctx, ctx_len, width, n_heads, embed_dim,
                n_nodes, f_in, gnn_hidden):
    ks = jax.random.split(key, 24)
    dt = jnp.float32
    sfx_len = ctx_len - 1 - n_ctx

    def nrm(k, shape, std=0.02):
        return (std * jax.random.normal(k, shape)).astype(dt)

    params = {
        # PromptLearner
        "ctx": nrm(ks[0], (n_ctx, width)),
        "token_prefix": nrm(ks[1], (n_cls, 1, width)),
        "token_suffix": nrm(ks[2], (n_cls, sfx_len, width)),
        # TextEncoder (single residual attention block)
        "pos_emb": nrm(ks[3], (ctx_len, width), 0.01),
        "ln1_g": jnp.ones((width,), dt), "ln1_b": jnp.zeros((width,), dt),
        "w_qkv": nrm(ks[4], (width, 3 * width), width ** -0.5),
        "b_qkv": jnp.zeros((3 * width,), dt),
        "w_proj": nrm(ks[5], (width, width), width ** -0.5),
        "b_proj": jnp.zeros((width,), dt),
        "ln2_g": jnp.ones((width,), dt), "ln2_b": jnp.zeros((width,), dt),
        "w_fc1": nrm(ks[6], (width, 4 * width), width ** -0.5),
        "b_fc1": jnp.zeros((4 * width,), dt),
        "w_fc2": nrm(ks[7], (4 * width, width), (4 * width) ** -0.5),
        "b_fc2": jnp.zeros((width,), dt),
        "lnf_g": jnp.ones((width,), dt), "lnf_b": jnp.zeros((width,), dt),
        "text_proj": nrm(ks[8], (width, embed_dim), width ** -0.5),
        # GNN image encoder
        "gnn_w1": nrm(ks[9], (f_in, gnn_hidden), f_in ** -0.5),
        "gnn_b1": jnp.zeros((gnn_hidden,), dt),
        "gnn_w2": nrm(ks[10], (gnn_hidden, embed_dim), gnn_hidden ** -0.5),
        "gnn_b2": jnp.zeros((embed_dim,), dt),
        # CLIP
        "logit_scale": jnp.array([math.log(1.0 / 0.07)], dtype=dt),
    }

    # synthetic tokenized prompts: SOT=49406 at pos 0, EOT=49407 (the argmax) at a
    # class-dependent position; matches the x[arange, argmax(tokens)] selection.
    tok = jnp.zeros((n_cls, ctx_len), dtype=jnp.int32).at[:, 0].set(49406)
    eot_pos = jnp.array([1 + n_ctx + 1 + i for i in range(n_cls)], dtype=jnp.int32)
    tok = tok.at[jnp.arange(n_cls), eot_pos].set(49407)
    params["tokenized_prompts"] = tok
    return params


# ----------------------------------------------------------------------------
if __name__ == "__main__":
    # small, self-consistent shapes
    N_CLS, N_CTX, CTX_LEN = 4, 4, 16
    WIDTH, N_HEADS, EMBED_DIM = 32, 4, 32
    N_NODES, F_IN, GNN_HIDDEN = 16, 32, 32
    BATCH = 2

    key = jax.random.PRNGKey(0)
    k_par, k_x, k_adj = jax.random.split(key, 3)

    params = make_params(
        k_par, n_cls=N_CLS, n_ctx=N_CTX, ctx_len=CTX_LEN, width=WIDTH,
        n_heads=N_HEADS, embed_dim=EMBED_DIM, n_nodes=N_NODES, f_in=F_IN,
        gnn_hidden=GNN_HIDDEN)

    # graph inputs
    x = jax.random.normal(k_x, (N_NODES, F_IN), dtype=jnp.float32)
    raw = jax.random.uniform(k_adj, (N_NODES, N_NODES), dtype=jnp.float32)
    sym = 0.5 * (raw + raw.T) + jnp.eye(N_NODES, dtype=jnp.float32)
    adj = sym / jnp.sum(sym, axis=1, keepdims=True)              # row-normalized adjacency
    s_n = jnp.array([3, 7], dtype=jnp.int32)                     # selected nodes (batch=2)

    fwd = jax.jit(lambda p_, s_, x_, a_: custom_clip_forward(p_, s_, x_, a_, N_HEADS))
    logits = fwd(params, s_n, x, adj)
    logits = jax.block_until_ready(logits)
    assert logits.shape == (BATCH, N_CLS) and bool(jnp.all(jnp.isfinite(logits)))
    print("KERNEL_OK")
</pallas_src>

<mosaic_0001>
module attributes {stable_mosaic.version = 11 : i64} {
  func.func @_gcn_gather_kernel(%arg0: i32, %arg1: memref<2xi32, #tpu.memory_space<smem>>, %arg2: memref<16x16xbf16, #tpu.memory_space<vmem>>, %arg3: memref<16x32xbf16, #tpu.memory_space<vmem>>, %arg4: memref<32x32xbf16, #tpu.memory_space<vmem>>, %arg5: memref<1x32xf32, #tpu.memory_space<vmem>>, %arg6: memref<32x32xbf16, #tpu.memory_space<vmem>>, %arg7: memref<1x32xf32, #tpu.memory_space<vmem>>, %arg8: memref<2x32xf32, #tpu.memory_space<vmem>>) attributes {dimension_semantics = [#tpu.dimension_semantics<arbitrary>], iteration_bounds = array<i64: 1>, scalar_prefetch = 0 : i64, scratch_operands = 0 : i64, tpu.core_type = #tpu.core_type<tc>, window_params = [{transform_indices = @transform_0, window_bounds = array<i64: 2>}, {pipeline_mode = #tpu.pipeline_mode<synchronous>, transform_indices = @transform_1, window_bounds = array<i64: 16, 16>}, {pipeline_mode = #tpu.pipeline_mode<synchronous>, transform_indices = @transform_2, window_bounds = array<i64: 16, 32>}, {pipeline_mode = #tpu.pipeline_mode<synchronous>, transform_indices = @transform_3, window_bounds = array<i64: 32, 32>}, {pipeline_mode = #tpu.pipeline_mode<synchronous>, transform_indices = @transform_4, window_bounds = array<i64: 1, 32>}, {pipeline_mode = #tpu.pipeline_mode<synchronous>, transform_indices = @transform_5, window_bounds = array<i64: 32, 32>}, {pipeline_mode = #tpu.pipeline_mode<synchronous>, transform_indices = @transform_6, window_bounds = array<i64: 1, 32>}, {pipeline_mode = #tpu.pipeline_mode<synchronous>, transform_indices = @transform_7, window_bounds = array<i64: 2, 32>}]} {
    %c0 = arith.constant 0 : index
    %c0_0 = arith.constant 0 : index
    %0 = vector.load %arg2[%c0, %c0_0] : memref<16x16xbf16, #tpu.memory_space<vmem>>, vector<16x16xbf16>
    %c0_1 = arith.constant 0 : index
    %c0_2 = arith.constant 0 : index
    %1 = vector.load %arg3[%c0_1, %c0_2] : memref<16x32xbf16, #tpu.memory_space<vmem>>, vector<16x32xbf16>
    %c0_3 = arith.constant 0 : index
    %c0_4 = arith.constant 0 : index
    %2 = vector.load %arg4[%c0_3, %c0_4] : memref<32x32xbf16, #tpu.memory_space<vmem>>, vector<32x32xbf16>
    %cst = arith.constant dense<0.000000e+00> : vector<16x32xf32>
    %3 = tpu.matmul %1, %2, %cst {dimension_numbers = #tpu.dot_dimension_numbers<[1], [0], [0], [1], [0, 0, 1, 1], [], []>} : vector<16x32xbf16>, vector<32x32xbf16>, vector<16x32xf32> -> vector<16x32xf32>
    %4 = arith.truncf %3 : vector<16x32xf32> to vector<16x32xbf16>
    %cst_5 = arith.constant dense<0.000000e+00> : vector<16x32xf32>
    %5 = tpu.matmul %0, %4, %cst_5 {dimension_numbers = #tpu.dot_dimension_numbers<[1], [0], [0], [1], [0, 0, 1, 1], [], []>} : vector<16x16xbf16>, vector<16x32xbf16>, vector<16x32xf32> -> vector<16x32xf32>
    %c0_6 = arith.constant 0 : index
    %c0_7 = arith.constant 0 : index
    %6 = vector.load %arg5[%c0_6, %c0_7] : memref<1x32xf32, #tpu.memory_space<vmem>>, vector<1x32xf32>
    %7 = vector.broadcast %6 : vector<1x32xf32> to vector<16x32xf32>
    %8 = arith.addf %5, %7 : vector<16x32xf32>
    %cst_8 = arith.constant 0.000000e+00 : f32
    %9 = vector.broadcast %cst_8 : f32 to vector<16x32xf32>
    %10 = arith.maximumf %8, %9 : vector<16x32xf32>
    %c0_9 = arith.constant 0 : index
    %c0_10 = arith.constant 0 : index
    %11 = vector.load %arg6[%c0_9, %c0_10] : memref<32x32xbf16, #tpu.memory_space<vmem>>, vector<32x32xbf16>
    %12 = arith.truncf %10 : vector<16x32xf32> to vector<16x32xbf16>
    %cst_11 = arith.constant dense<0.000000e+00> : vector<16x32xf32>
    %13 = tpu.matmul %12, %11, %cst_11 {dimension_numbers = #tpu.dot_dimension_numbers<[1], [0], [0], [1], [0, 0, 1, 1], [], []>} : vector<16x32xbf16>, vector<32x32xbf16>, vector<16x32xf32> -> vector<16x32xf32>
    %14 = arith.truncf %13 : vector<16x32xf32> to vector<16x32xbf16>
    %cst_12 = arith.constant dense<0.000000e+00> : vector<16x32xf32>
    %15 = tpu.matmul %0, %14, %cst_12 {dimension_numbers = #tpu.dot_dimension_numbers<[1], [0], [0], [1], [0, 0, 1, 1], [], []>} : vector<16x16xbf16>, vector<16x32xbf16>, vector<16x32xf32> -> vector<16x32xf32>
    %c0_13 = arith.constant 0 : index
    %c0_14 = arith.constant 0 : index
    %16 = vector.load %arg7[%c0_13, %c0_14] : memref<1x32xf32, #tpu.memory_space<vmem>>, vector<1x32xf32>
    %17 = vector.broadcast %16 : vector<1x32xf32> to vector<16x32xf32>
    %18 = arith.addf %15, %17 : vector<16x32xf32>
    %19 = tpu.iota {dimensions = array<i32: 0>} : vector<16x1xi32>
    %c0_15 = arith.constant 0 : index
    %20 = memref.load %arg1[%c0_15] : memref<2xi32, #tpu.memory_space<smem>>
    %21 = vector.broadcast %20 : i32 to vector<16x1xi32>
    %22 = arith.cmpi eq, %19, %21 : vector<16x1xi32>
    %23 = arith.extui %22 : vector<16x1xi1> to vector<16x1xi32>
    %24 = arith.sitofp %23 : vector<16x1xi32> to vector<16x1xf32>
    %25 = vector.broadcast %24 : vector<16x1xf32> to vector<16x32xf32>
    %26 = arith.mulf %18, %25 : vector<16x32xf32>
    %cst_16 = arith.constant dense<0.000000e+00> : vector<32xf32>
    %27 = vector.multi_reduction <add>, %26, %cst_16 [0] : vector<16x32xf32> to vector<32xf32>
    %28 = vector.shape_cast %27 : vector<32xf32> to vector<1x32xf32>
    %c0_17 = arith.constant 0 : index
    %c0_18 = arith.constant 0 : index
    %29 = vector.load %arg8[%c0_17, %c0_18] : memref<2x32xf32, #tpu.memory_space<vmem>>, vector<1x32xf32>
    tpu.vector_store %arg8[%c0_17, %c0_18], %28 {strides = array<i32>} : memref<2x32xf32, #tpu.memory_space<vmem>>, vector<1x32xf32>,
    %c1 = arith.constant 1 : index
    %30 = memref.load %arg1[%c1] : memref<2xi32, #tpu.memory_space<smem>>
    %31 = vector.broadcast %30 : i32 to vector<16x1xi32>
    %32 = arith.cmpi eq, %19, %31 : vector<16x1xi32>
    %33 = arith.extui %32 : vector<16x1xi1> to vector<16x1xi32>
    %34 = arith.sitofp %33 : vector<16x1xi32> to vector<16x1xf32>
    %35 = vector.broadcast %34 : vector<16x1xf32> to vector<16x32xf32>
    %36 = arith.mulf %18, %35 : vector<16x32xf32>
    %cst_19 = arith.constant dense<0.000000e+00> : vector<32xf32>
    %37 = vector.multi_reduction <add>, %36, %cst_19 [0] : vector<16x32xf32> to vector<32xf32>
    %38 = vector.shape_cast %37 : vector<32xf32> to vector<1x32xf32>
    %c1_20 = arith.constant 1 : index
    %c0_21 = arith.constant 0 : index
    %39 = vector.load %arg8[%c1_20, %c0_21] : memref<2x32xf32, #tpu.memory_space<vmem>>, vector<1x32xf32>
    tpu.vector_store %arg8[%c1_20, %c0_21], %38 {strides = array<i32>} : memref<2x32xf32, #tpu.memory_space<vmem>>, vector<1x32xf32>,
    return
  }
  func.func @transform_0(%arg0: i32) -> i32 {
    %c0_i32 = arith.constant 0 : i32
    %c0_i32_0 = arith.constant 0 : i32
    return %c0_i32 : i32
  }
  func.func @transform_1(%arg0: i32) -> (i32, i32) {
    %c0_i32 = arith.constant 0 : i32
    %c0_i32_0 = arith.constant 0 : i32
    %c0_i32_1 = arith.constant 0 : i32
    return %c0_i32, %c0_i32_0 : i32, i32
  }
  func.func @transform_2(%arg0: i32) -> (i32, i32) {
    %c0_i32 = arith.constant 0 : i32
    %c0_i32_0 = arith.constant 0 : i32
    %c0_i32_1 = arith.constant 0 : i32
    return %c0_i32, %c0_i32_0 : i32, i32
  }
  func.func @transform_3(%arg0: i32) -> (i32, i32) {
    %c0_i32 = arith.constant 0 : i32
    %c0_i32_0 = arith.constant 0 : i32
    %c0_i32_1 = arith.constant 0 : i32
    return %c0_i32, %c0_i32_0 : i32, i32
  }
  func.func @transform_4(%arg0: i32) -> (i32, i32) {
    %c0_i32 = arith.constant 0 : i32
    %c0_i32_0 = arith.constant 0 : i32
    %c0_i32_1 = arith.constant 0 : i32
    return %c0_i32, %c0_i32_0 : i32, i32
  }
  func.func @transform_5(%arg0: i32) -> (i32, i32) {
    %c0_i32 = arith.constant 0 : i32
    %c0_i32_0 = arith.constant 0 : i32
    %c0_i32_1 = arith.constant 0 : i32
    return %c0_i32, %c0_i32_0 : i32, i32
  }
  func.func @transform_6(%arg0: i32) -> (i32, i32) {
    %c0_i32 = arith.constant 0 : i32
    %c0_i32_0 = arith.constant 0 : i32
    %c0_i32_1 = arith.constant 0 : i32
    return %c0_i32, %c0_i32_0 : i32, i32
  }
  func.func @transform_7(%arg0: i32) -> (i32, i32) {
    %c0_i32 = arith.constant 0 : i32
    %c0_i32_0 = arith.constant 0 : i32
    %c0_i32_1 = arith.constant 0 : i32
    return %c0_i32, %c0_i32_0 : i32, i32
  }
}

module attributes {stable_mosaic.version = 11 : i64} {
  func.func @_logits_kernel(%arg0: i32, %arg1: memref<2x32xf32, #tpu.memory_space<vmem>>, %arg2: memref<4x32xf32, #tpu.memory_space<vmem>>, %arg3: memref<1xf32, #tpu.memory_space<smem>>, %arg4: memref<2x4xf32, #tpu.memory_space<vmem>>) attributes {dimension_semantics = [#tpu.dimension_semantics<arbitrary>], iteration_bounds = array<i64: 1>, scalar_prefetch = 0 : i64, scratch_operands = 0 : i64, tpu.core_type = #tpu.core_type<tc>, window_params = [{pipeline_mode = #tpu.pipeline_mode<synchronous>, transform_indices = @transform_0, window_bounds = array<i64: 2, 32>}, {pipeline_mode = #tpu.pipeline_mode<synchronous>, transform_indices = @transform_1, window_bounds = array<i64: 4, 32>}, {transform_indices = @transform_2, window_bounds = array<i64: 1>}, {pipeline_mode = #tpu.pipeline_mode<synchronous>, transform_indices = @transform_3, window_bounds = array<i64: 2, 4>}]} {
    %c0 = arith.constant 0 : index
    %c0_0 = arith.constant 0 : index
    %0 = vector.load %arg1[%c0, %c0_0] : memref<2x32xf32, #tpu.memory_space<vmem>>, vector<2x32xf32>
    %c0_1 = arith.constant 0 : index
    %c0_2 = arith.constant 0 : index
    %1 = vector.load %arg2[%c0_1, %c0_2] : memref<4x32xf32, #tpu.memory_space<vmem>>, vector<4x32xf32>
    %2 = arith.mulf %0, %0 : vector<2x32xf32>
    %cst = arith.constant dense<0.000000e+00> : vector<2xf32>
    %3 = vector.multi_reduction <add>, %2, %cst [1] : vector<2x32xf32> to vector<2xf32>
    %4 = vector.shape_cast %3 : vector<2xf32> to vector<2x1xf32>
    %5 = math.rsqrt %4 : vector<2x1xf32>
    %6 = vector.broadcast %5 : vector<2x1xf32> to vector<2x32xf32>
    %7 = arith.mulf %0, %6 : vector<2x32xf32>
    %8 = arith.mulf %1, %1 : vector<4x32xf32>
    %cst_3 = arith.constant dense<0.000000e+00> : vector<4xf32>
    %9 = vector.multi_reduction <add>, %8, %cst_3 [1] : vector<4x32xf32> to vector<4xf32>
    %10 = vector.shape_cast %9 : vector<4xf32> to vector<4x1xf32>
    %11 = math.rsqrt %10 : vector<4x1xf32>
    %12 = vector.broadcast %11 : vector<4x1xf32> to vector<4x32xf32>
    %13 = arith.mulf %1, %12 : vector<4x32xf32>
    %14 = arith.truncf %7 : vector<2x32xf32> to vector<2x32xbf16>
    %15 = arith.truncf %13 : vector<4x32xf32> to vector<4x32xbf16>
    %cst_4 = arith.constant dense<0.000000e+00> : vector<2x4xf32>
    %16 = tpu.matmul %14, %15, %cst_4 {dimension_numbers = #tpu.dot_dimension_numbers<[1], [1], [0], [0], [0, 0, 1, 0], [], []>} : vector<2x32xbf16>, vector<4x32xbf16>, vector<2x4xf32> -> vector<2x4xf32>
    %c0_5 = arith.constant 0 : index
    %17 = memref.load %arg3[%c0_5] : memref<1xf32, #tpu.memory_space<smem>>
    %18 = math.exp %17 : f32
    %19 = vector.broadcast %18 : f32 to vector<2x4xf32>
    %20 = arith.mulf %19, %16 : vector<2x4xf32>
    %c0_6 = arith.constant 0 : index
    %c0_7 = arith.constant 0 : index
    %21 = vector.load %arg4[%c0_6, %c0_7] : memref<2x4xf32, #tpu.memory_space<vmem>>, vector<2x4xf32>
    tpu.vector_store %arg4[%c0_6, %c0_7], %20 {strides = array<i32>} : memref<2x4xf32, #tpu.memory_space<vmem>>, vector<2x4xf32>,
    return
  }
  func.func @transform_0(%arg0: i32) -> (i32, i32) {
    %c0_i32 = arith.constant 0 : i32
    %c0_i32_0 = arith.constant 0 : i32
    %c0_i32_1 = arith.constant 0 : i32
    return %c0_i32, %c0_i32_0 : i32, i32
  }
  func.func @transform_1(%arg0: i32) -> (i32, i32) {
    %c0_i32 = arith.constant 0 : i32
    %c0_i32_0 = arith.constant 0 : i32
    %c0_i32_1 = arith.constant 0 : i32
    return %c0_i32, %c0_i32_0 : i32, i32
  }
  func.func @transform_2(%arg0: i32) -> i32 {
    %c0_i32 = arith.constant 0 : i32
    %c0_i32_0 = arith.constant 0 : i32
    return %c0_i32 : i32
  }
  func.func @transform_3(%arg0: i32) -> (i32, i32) {
    %c0_i32 = arith.constant 0 : i32
    %c0_i32_0 = arith.constant 0 : i32
    %c0_i32_1 = arith.constant 0 : i32
    return %c0_i32, %c0_i32_0 : i32, i32
  }
}

module attributes {stable_mosaic.version = 11 : i64} {
  func.func @_text_block_kernel(%arg0: i32, %arg1: memref<4xi32, #tpu.memory_space<smem>>, %arg2: memref<1x16x32xf32, #tpu.memory_space<vmem>>, %arg3: memref<16x32xf32, #tpu.memory_space<vmem>>, %arg4: memref<1x32xf32, #tpu.memory_space<vmem>>, %arg5: memref<1x32xf32, #tpu.memory_space<vmem>>, %arg6: memref<32x96xbf16, #tpu.memory_space<vmem>>, %arg7: memref<1x96xf32, #tpu.memory_space<vmem>>, %arg8: memref<32x32xbf16, #tpu.memory_space<vmem>>, %arg9: memref<1x32xf32, #tpu.memory_space<vmem>>, %arg10: memref<1x32xf32, #tpu.memory_space<vmem>>, %arg11: memref<1x32xf32, #tpu.memory_space<vmem>>, %arg12: memref<32x128xbf16, #tpu.memory_space<vmem>>, %arg13: memref<1x128xf32, #tpu.memory_space<vmem>>, %arg14: memref<128x32xbf16, #tpu.memory_space<vmem>>, %arg15: memref<1x32xf32, #tpu.memory_space<vmem>>, %arg16: memref<1x32xf32, #tpu.memory_space<vmem>>, %arg17: memref<1x32xf32, #tpu.memory_space<vmem>>, %arg18: memref<32x32xbf16, #tpu.memory_space<vmem>>, %arg19: memref<1x1x32xf32, #tpu.memory_space<vmem>>, %arg20: memref<16x32xf32, #tpu.memory_space<vmem>>) attributes {dimension_semantics = [#tpu.dimension_semantics<parallel>], iteration_bounds = array<i64: 4>, scalar_prefetch = 0 : i64, scratch_operands = 1 : i64, tpu.core_type = #tpu.core_type<tc>, window_params = [{transform_indices = @transform_0, window_bounds = array<i64: 4>}, {transform_indices = @transform_1, window_bounds = array<i64: 1, 16, 32>}, {pipeline_mode = #tpu.pipeline_mode<synchronous>, transform_indices = @transform_2, window_bounds = array<i64: 16, 32>}, {pipeline_mode = #tpu.pipeline_mode<synchronous>, transform_indices = @transform_3, window_bounds = array<i64: 1, 32>}, {pipeline_mode = #tpu.pipeline_mode<synchronous>, transform_indices = @transform_4, window_bounds = array<i64: 1, 32>}, {pipeline_mode = #tpu.pipeline_mode<synchronous>, transform_indices = @transform_5, window_bounds = array<i64: 32, 96>}, {pipeline_mode = #tpu.pipeline_mode<synchronous>, transform_indices = @transform_6, window_bounds = array<i64: 1, 96>}, {pipeline_mode = #tpu.pipeline_mode<synchronous>, transform_indices = @transform_7, window_bounds = array<i64: 32, 32>}, {pipeline_mode = #tpu.pipeline_mode<synchronous>, transform_indices = @transform_8, window_bounds = array<i64: 1, 32>}, {pipeline_mode = #tpu.pipeline_mode<synchronous>, transform_indices = @transform_9, window_bounds = array<i64: 1, 32>}, {pipeline_mode = #tpu.pipeline_mode<synchronous>, transform_indices = @transform_10, window_bounds = array<i64: 1, 32>}, {pipeline_mode = #tpu.pipeline_mode<synchronous>, transform_indices = @transform_11, window_bounds = array<i64: 32, 128>}, {pipeline_mode = #tpu.pipeline_mode<synchronous>, transform_indices = @transform_12, window_bounds = array<i64: 1, 128>}, {pipeline_mode = #tpu.pipeline_mode<synchronous>, transform_indices = @transform_13, window_bounds = array<i64: 128, 32>}, {pipeline_mode = #tpu.pipeline_mode<synchronous>, transform_indices = @transform_14, window_bounds = array<i64: 1, 32>}, {pipeline_mode = #tpu.pipeline_mode<synchronous>, transform_indices = @transform_15, window_bounds = array<i64: 1, 32>}, {pipeline_mode = #tpu.pipeline_mode<synchronous>, transform_indices = @transform_16, window_bounds = array<i64: 1, 32>}, {pipeline_mode = #tpu.pipeline_mode<synchronous>, transform_indices = @transform_17, window_bounds = array<i64: 32, 32>}, {transform_indices = @transform_18, window_bounds = array<i64: 1, 1, 32>}]} {
    %c0 = arith.constant 0 : index
    %c0_0 = arith.constant 0 : index
    %c0_1 = arith.constant 0 : index
    %0 = vector.load %arg2[%c0, %c0_0, %c0_1] : memref<1x16x32xf32, #tpu.memory_space<vmem>>, vector<1x16x32xf32>
    %1 = vector.shape_cast %0 : vector<1x16x32xf32> to vector<16x32xf32>
    %c0_2 = arith.constant 0 : index
    %c0_3 = arith.constant 0 : index
    %2 = vector.load %arg3[%c0_2, %c0_3] : memref<16x32xf32, #tpu.memory_space<vmem>>, vector<16x32xf32>
    %3 = arith.addf %1, %2 : vector<16x32xf32>
    %c0_4 = arith.constant 0 : index
    %c0_5 = arith.constant 0 : index
    %4 = vector.load %arg4[%c0_4, %c0_5] : memref<1x32xf32, #tpu.memory_space<vmem>>, vector<1x32xf32>
    %c0_6 = arith.constant 0 : index
    %c0_7 = arith.constant 0 : index
    %5 = vector.load %arg5[%c0_6, %c0_7] : memref<1x32xf32, #tpu.memory_space<vmem>>, vector<1x32xf32>
    %cst = arith.constant dense<0.000000e+00> : vector<16xf32>
    %6 = vector.multi_reduction <add>, %3, %cst [1] : vector<16x32xf32> to vector<16xf32>
    %7 = vector.shape_cast %6 : vector<16xf32> to vector<16x1xf32>
    %cst_8 = arith.constant 3.200000e+01 : f32
    %8 = vector.broadcast %cst_8 : f32 to vector<16x1xf32>
    %9 = arith.divf %7, %8 : vector<16x1xf32>
    %10 = vector.broadcast %9 : vector<16x1xf32> to vector<16x32xf32>
    %11 = arith.subf %3, %10 : vector<16x32xf32>
    %12 = arith.mulf %11, %11 : vector<16x32xf32>
    %cst_9 = arith.constant dense<0.000000e+00> : vector<16xf32>
    %13 = vector.multi_reduction <add>, %12, %cst_9 [1] : vector<16x32xf32> to vector<16xf32>
    %14 = vector.shape_cast %13 : vector<16xf32> to vector<16x1xf32>
    %cst_10 = arith.constant 3.200000e+01 : f32
    %15 = vector.broadcast %cst_10 : f32 to vector<16x1xf32>
    %16 = arith.divf %14, %15 : vector<16x1xf32>
    %cst_11 = arith.constant 9.99999974E-6 : f32
    %17 = vector.broadcast %cst_11 : f32 to vector<16x1xf32>
    %18 = arith.addf %16, %17 : vector<16x1xf32>
    %19 = math.rsqrt %18 : vector<16x1xf32>
    %20 = vector.broadcast %19 : vector<16x1xf32> to vector<16x32xf32>
    %21 = arith.mulf %11, %20 : vector<16x32xf32>
    %22 = vector.broadcast %4 : vector<1x32xf32> to vector<16x32xf32>
    %23 = arith.mulf %21, %22 : vector<16x32xf32>
    %24 = vector.broadcast %5 : vector<1x32xf32> to vector<16x32xf32>
    %25 = arith.addf %23, %24 : vector<16x32xf32>
    %c0_12 = arith.constant 0 : index
    %c0_13 = arith.constant 0 : index
    %26 = vector.load %arg6[%c0_12, %c0_13] : memref<32x96xbf16, #tpu.memory_space<vmem>>, vector<32x96xbf16>
    %c0_14 = arith.constant 0 : index
    %c0_15 = arith.constant 0 : index
    %27 = vector.load %arg7[%c0_14, %c0_15] : memref<1x96xf32, #tpu.memory_space<vmem>>, vector<1x96xf32>
    %28 = arith.truncf %25 : vector<16x32xf32> to vector<16x32xbf16>
    %cst_16 = arith.constant dense<0.000000e+00> : vector<16x96xf32>
    %29 = tpu.matmul %28, %26, %cst_16 {dimension_numbers = #tpu.dot_dimension_numbers<[1], [0], [0], [1], [0, 0, 1, 1], [], []>} : vector<16x32xbf16>, vector<32x96xbf16>, vector<16x96xf32> -> vector<16x96xf32>
    %30 = vector.broadcast %27 : vector<1x96xf32> to vector<16x96xf32>
    %31 = arith.addf %29, %30 : vector<16x96xf32>
    %32 = tpu.iota {dimensions = array<i32: 0>} : vector<16x16xi32>
    %33 = tpu.iota {dimensions = array<i32: 1>} : vector<16x16xi32>
    %34 = arith.cmpi sge, %32, %33 : vector<16x16xi32>
    %cst_17 = arith.constant 0.000000e+00 : f32
    %cst_18 = arith.constant -1.000000e+09 : f32
    %35 = vector.broadcast %cst_17 : f32 to vector<16x16xf32>
    %36 = vector.broadcast %cst_18 : f32 to vector<16x16xf32>
    %37 = arith.select %34, %35, %36 : vector<16x16xi1>, vector<16x16xf32>
    %38 = vector.extract_strided_slice %31 {offsets = [0, 0], sizes = [16, 8], strides = [1, 1]} : vector<16x96xf32> to vector<16x8xf32>
    %39 = vector.extract_strided_slice %31 {offsets = [0, 32], sizes = [16, 8], strides = [1, 1]} : vector<16x96xf32> to vector<16x8xf32>
    %40 = vector.extract_strided_slice %31 {offsets = [0, 64], sizes = [16, 8], strides = [1, 1]} : vector<16x96xf32> to vector<16x8xf32>
    %41 = arith.truncf %38 : vector<16x8xf32> to vector<16x8xbf16>
    %42 = arith.truncf %39 : vector<16x8xf32> to vector<16x8xbf16>
    %cst_19 = arith.constant dense<0.000000e+00> : vector<16x16xf32>
    %43 = tpu.matmul %41, %42, %cst_19 {dimension_numbers = #tpu.dot_dimension_numbers<[1], [1], [0], [0], [0, 0, 1, 0], [], []>} : vector<16x8xbf16>, vector<16x8xbf16>, vector<16x16xf32> -> vector<16x16xf32>
    %cst_20 = arith.constant 0.353553385 : f32
    %44 = vector.broadcast %cst_20 : f32 to vector<16x16xf32>
    %45 = arith.mulf %43, %44 : vector<16x16xf32>
    %46 = arith.addf %45, %37 : vector<16x16xf32>
    %cst_21 = arith.constant dense<0xFF800000> : vector<16xf32>
    %47 = vector.multi_reduction <maximumf>, %46, %cst_21 [1] : vector<16x16xf32> to vector<16xf32>
    %48 = vector.shape_cast %47 : vector<16xf32> to vector<16x1xf32>
    %49 = vector.broadcast %48 : vector<16x1xf32> to vector<16x16xf32>
    %50 = arith.subf %46, %49 : vector<16x16xf32>
    %51 = math.exp %50 : vector<16x16xf32>
    %cst_22 = arith.constant dense<0.000000e+00> : vector<16xf32>
    %52 = vector.multi_reduction <add>, %51, %cst_22 [1] : vector<16x16xf32> to vector<16xf32>
    %53 = vector.shape_cast %52 : vector<16xf32> to vector<16x1xf32>
    %54 = tpu.reciprocal %53 {approx = true} : vector<16x1xf32> -> vector<16x1xf32>
    %55 = vector.broadcast %54 : vector<16x1xf32> to vector<16x16xf32>
    %56 = arith.mulf %51, %55 : vector<16x16xf32>
    %57 = arith.truncf %56 : vector<16x16xf32> to vector<16x16xbf16>
    %58 = arith.truncf %40 : vector<16x8xf32> to vector<16x8xbf16>
    %cst_23 = arith.constant dense<0.000000e+00> : vector<16x8xf32>
    %59 = tpu.matmul %57, %58, %cst_23 {dimension_numbers = #tpu.dot_dimension_numbers<[1], [0], [0], [1], [0, 0, 1, 1], [], []>} : vector<16x16xbf16>, vector<16x8xbf16>, vector<16x8xf32> -> vector<16x8xf32>
    %c0_24 = arith.constant 0 : index
    %c0_25 = arith.constant 0 : index
    %60 = vector.load %arg20[%c0_24, %c0_25] : memref<16x32xf32, #tpu.memory_space<vmem>>, vector<16x8xf32>
    tpu.vector_store %arg20[%c0_24, %c0_25], %59 {strides = array<i32>} : memref<16x32xf32, #tpu.memory_space<vmem>>, vector<16x8xf32>,
    %61 = vector.extract_strided_slice %31 {offsets = [0, 8], sizes = [16, 8], strides = [1, 1]} : vector<16x96xf32> to vector<16x8xf32>
    %62 = vector.extract_strided_slice %31 {offsets = [0, 40], sizes = [16, 8], strides = [1, 1]} : vector<16x96xf32> to vector<16x8xf32>
    %63 = vector.extract_strided_slice %31 {offsets = [0, 72], sizes = [16, 8], strides = [1, 1]} : vector<16x96xf32> to vector<16x8xf32>
    %64 = arith.truncf %61 : vector<16x8xf32> to vector<16x8xbf16>
    %65 = arith.truncf %62 : vector<16x8xf32> to vector<16x8xbf16>
    %cst_26 = arith.constant dense<0.000000e+00> : vector<16x16xf32>
    %66 = tpu.matmul %64, %65, %cst_26 {dimension_numbers = #tpu.dot_dimension_numbers<[1], [1], [0], [0], [0, 0, 1, 0], [], []>} : vector<16x8xbf16>, vector<16x8xbf16>, vector<16x16xf32> -> vector<16x16xf32>
    %cst_27 = arith.constant 0.353553385 : f32
    %67 = vector.broadcast %cst_27 : f32 to vector<16x16xf32>
    %68 = arith.mulf %66, %67 : vector<16x16xf32>
    %69 = arith.addf %68, %37 : vector<16x16xf32>
    %cst_28 = arith.constant dense<0xFF800000> : vector<16xf32>
    %70 = vector.multi_reduction <maximumf>, %69, %cst_28 [1] : vector<16x16xf32> to vector<16xf32>
    %71 = vector.shape_cast %70 : vector<16xf32> to vector<16x1xf32>
    %72 = vector.broadcast %71 : vector<16x1xf32> to vector<16x16xf32>
    %73 = arith.subf %69, %72 : vector<16x16xf32>
    %74 = math.exp %73 : vector<16x16xf32>
    %cst_29 = arith.constant dense<0.000000e+00> : vector<16xf32>
    %75 = vector.multi_reduction <add>, %74, %cst_29 [1] : vector<16x16xf32> to vector<16xf32>
    %76 = vector.shape_cast %75 : vector<16xf32> to vector<16x1xf32>
    %77 = tpu.reciprocal %76 {approx = true} : vector<16x1xf32> -> vector<16x1xf32>
    %78 = vector.broadcast %77 : vector<16x1xf32> to vector<16x16xf32>
    %79 = arith.mulf %74, %78 : vector<16x16xf32>
    %80 = arith.truncf %79 : vector<16x16xf32> to vector<16x16xbf16>
    %81 = arith.truncf %63 : vector<16x8xf32> to vector<16x8xbf16>
    %cst_30 = arith.constant dense<0.000000e+00> : vector<16x8xf32>
    %82 = tpu.matmul %80, %81, %cst_30 {dimension_numbers = #tpu.dot_dimension_numbers<[1], [0], [0], [1], [0, 0, 1, 1], [], []>} : vector<16x16xbf16>, vector<16x8xbf16>, vector<16x8xf32> -> vector<16x8xf32>
    %c0_31 = arith.constant 0 : index
    %c8 = arith.constant 8 : index
    %83 = vector.load %arg20[%c0_31, %c8] : memref<16x32xf32, #tpu.memory_space<vmem>>, vector<16x8xf32>
    tpu.vector_store %arg20[%c0_31, %c8], %82 {strides = array<i32>} : memref<16x32xf32, #tpu.memory_space<vmem>>, vector<16x8xf32>,
    %84 = vector.extract_strided_slice %31 {offsets = [0, 16], sizes = [16, 8], strides = [1, 1]} : vector<16x96xf32> to vector<16x8xf32>
    %85 = vector.extract_strided_slice %31 {offsets = [0, 48], sizes = [16, 8], strides = [1, 1]} : vector<16x96xf32> to vector<16x8xf32>
    %86 = vector.extract_strided_slice %31 {offsets = [0, 80], sizes = [16, 8], strides = [1, 1]} : vector<16x96xf32> to vector<16x8xf32>
    %87 = arith.truncf %84 : vector<16x8xf32> to vector<16x8xbf16>
    %88 = arith.truncf %85 : vector<16x8xf32> to vector<16x8xbf16>
    %cst_32 = arith.constant dense<0.000000e+00> : vector<16x16xf32>
    %89 = tpu.matmul %87, %88, %cst_32 {dimension_numbers = #tpu.dot_dimension_numbers<[1], [1], [0], [0], [0, 0, 1, 0], [], []>} : vector<16x8xbf16>, vector<16x8xbf16>, vector<16x16xf32> -> vector<16x16xf32>
    %cst_33 = arith.constant 0.353553385 : f32
    %90 = vector.broadcast %cst_33 : f32 to vector<16x16xf32>
    %91 = arith.mulf %89, %90 : vector<16x16xf32>
    %92 = arith.addf %91, %37 : vector<16x16xf32>
    %cst_34 = arith.constant dense<0xFF800000> : vector<16xf32>
    %93 = vector.multi_reduction <maximumf>, %92, %cst_34 [1] : vector<16x16xf32> to vector<16xf32>
    %94 = vector.shape_cast %93 : vector<16xf32> to vector<16x1xf32>
    %95 = vector.broadcast %94 : vector<16x1xf32> to vector<16x16xf32>
    %96 = arith.subf %92, %95 : vector<16x16xf32>
    %97 = math.exp %96 : vector<16x16xf32>
    %cst_35 = arith.constant dense<0.000000e+00> : vector<16xf32>
    %98 = vector.multi_reduction <add>, %97, %cst_35 [1] : vector<16x16xf32> to vector<16xf32>
    %99 = vector.shape_cast %98 : vector<16xf32> to vector<16x1xf32>
    %100 = tpu.reciprocal %99 {approx = true} : vector<16x1xf32> -> vector<16x1xf32>
    %101 = vector.broadcast %100 : vector<16x1xf32> to vector<16x16xf32>
    %102 = arith.mulf %97, %101 : vector<16x16xf32>
    %103 = arith.truncf %102 : vector<16x16xf32> to vector<16x16xbf16>
    %104 = arith.truncf %86 : vector<16x8xf32> to vector<16x8xbf16>
    %cst_36 = arith.constant dense<0.000000e+00> : vector<16x8xf32>
    %105 = tpu.matmul %103, %104, %cst_36 {dimension_numbers = #tpu.dot_dimension_numbers<[1], [0], [0], [1], [0, 0, 1, 1], [], []>} : vector<16x16xbf16>, vector<16x8xbf16>, vector<16x8xf32> -> vector<16x8xf32>
    %c0_37 = arith.constant 0 : index
    %c16 = arith.constant 16 : index
    %106 = vector.load %arg20[%c0_37, %c16] : memref<16x32xf32, #tpu.memory_space<vmem>>, vector<16x8xf32>
    tpu.vector_store %arg20[%c0_37, %c16], %105 {strides = array<i32>} : memref<16x32xf32, #tpu.memory_space<vmem>>, vector<16x8xf32>,
    %107 = vector.extract_strided_slice %31 {offsets = [0, 24], sizes = [16, 8], strides = [1, 1]} : vector<16x96xf32> to vector<16x8xf32>
    %108 = vector.extract_strided_slice %31 {offsets = [0, 56], sizes = [16, 8], strides = [1, 1]} : vector<16x96xf32> to vector<16x8xf32>
    %109 = vector.extract_strided_slice %31 {offsets = [0, 88], sizes = [16, 8], strides = [1, 1]} : vector<16x96xf32> to vector<16x8xf32>
    %110 = arith.truncf %107 : vector<16x8xf32> to vector<16x8xbf16>
    %111 = arith.truncf %108 : vector<16x8xf32> to vector<16x8xbf16>
    %cst_38 = arith.constant dense<0.000000e+00> : vector<16x16xf32>
    %112 = tpu.matmul %110, %111, %cst_38 {dimension_numbers = #tpu.dot_dimension_numbers<[1], [1], [0], [0], [0, 0, 1, 0], [], []>} : vector<16x8xbf16>, vector<16x8xbf16>, vector<16x16xf32> -> vector<16x16xf32>
    %cst_39 = arith.constant 0.353553385 : f32
    %113 = vector.broadcast %cst_39 : f32 to vector<16x16xf32>
    %114 = arith.mulf %112, %113 : vector<16x16xf32>
    %115 = arith.addf %114, %37 : vector<16x16xf32>
    %cst_40 = arith.constant dense<0xFF800000> : vector<16xf32>
    %116 = vector.multi_reduction <maximumf>, %115, %cst_40 [1] : vector<16x16xf32> to vector<16xf32>
    %117 = vector.shape_cast %116 : vector<16xf32> to vector<16x1xf32>
    %118 = vector.broadcast %117 : vector<16x1xf32> to vector<16x16xf32>
    %119 = arith.subf %115, %118 : vector<16x16xf32>
    %120 = math.exp %119 : vector<16x16xf32>
    %cst_41 = arith.constant dense<0.000000e+00> : vector<16xf32>
    %121 = vector.multi_reduction <add>, %120, %cst_41 [1] : vector<16x16xf32> to vector<16xf32>
    %122 = vector.shape_cast %121 : vector<16xf32> to vector<16x1xf32>
    %123 = tpu.reciprocal %122 {approx = true} : vector<16x1xf32> -> vector<16x1xf32>
    %124 = vector.broadcast %123 : vector<16x1xf32> to vector<16x16xf32>
    %125 = arith.mulf %120, %124 : vector<16x16xf32>
    %126 = arith.truncf %125 : vector<16x16xf32> to vector<16x16xbf16>
    %127 = arith.truncf %109 : vector<16x8xf32> to vector<16x8xbf16>
    %cst_42 = arith.constant dense<0.000000e+00> : vector<16x8xf32>
    %128 = tpu.matmul %126, %127, %cst_42 {dimension_numbers = #tpu.dot_dimension_numbers<[1], [0], [0], [1], [0, 0, 1, 1], [], []>} : vector<16x16xbf16>, vector<16x8xbf16>, vector<16x8xf32> -> vector<16x8xf32>
    %c0_43 = arith.constant 0 : index
    %c24 = arith.constant 24 : index
    %129 = vector.load %arg20[%c0_43, %c24] : memref<16x32xf32, #tpu.memory_space<vmem>>, vector<16x8xf32>
    tpu.vector_store %arg20[%c0_43, %c24], %128 {strides = array<i32>} : memref<16x32xf32, #tpu.memory_space<vmem>>, vector<16x8xf32>,
    %c0_44 = arith.constant 0 : index
    %c0_45 = arith.constant 0 : index
    %130 = vector.load %arg20[%c0_44, %c0_45] : memref<16x32xf32, #tpu.memory_space<vmem>>, vector<16x32xf32>
    %c0_46 = arith.constant 0 : index
    %c0_47 = arith.constant 0 : index
    %131 = vector.load %arg8[%c0_46, %c0_47] : memref<32x32xbf16, #tpu.memory_space<vmem>>, vector<32x32xbf16>
    %c0_48 = arith.constant 0 : index
    %c0_49 = arith.constant 0 : index
    %132 = vector.load %arg9[%c0_48, %c0_49] : memref<1x32xf32, #tpu.memory_space<vmem>>, vector<1x32xf32>
    %133 = arith.truncf %130 : vector<16x32xf32> to vector<16x32xbf16>
    %cst_50 = arith.constant dense<0.000000e+00> : vector<16x32xf32>
    %134 = tpu.matmul %133, %131, %cst_50 {dimension_numbers = #tpu.dot_dimension_numbers<[1], [0], [0], [1], [0, 0, 1, 1], [], []>} : vector<16x32xbf16>, vector<32x32xbf16>, vector<16x32xf32> -> vector<16x32xf32>
    %135 = vector.broadcast %132 : vector<1x32xf32> to vector<16x32xf32>
    %136 = arith.addf %134, %135 : vector<16x32xf32>
    %137 = arith.addf %3, %136 : vector<16x32xf32>
    %c0_51 = arith.constant 0 : index
    %c0_52 = arith.constant 0 : index
    %138 = vector.load %arg10[%c0_51, %c0_52] : memref<1x32xf32, #tpu.memory_space<vmem>>, vector<1x32xf32>
    %c0_53 = arith.constant 0 : index
    %c0_54 = arith.constant 0 : index
    %139 = vector.load %arg11[%c0_53, %c0_54] : memref<1x32xf32, #tpu.memory_space<vmem>>, vector<1x32xf32>
    %cst_55 = arith.constant dense<0.000000e+00> : vector<16xf32>
    %140 = vector.multi_reduction <add>, %137, %cst_55 [1] : vector<16x32xf32> to vector<16xf32>
    %141 = vector.shape_cast %140 : vector<16xf32> to vector<16x1xf32>
    %cst_56 = arith.constant 3.200000e+01 : f32
    %142 = vector.broadcast %cst_56 : f32 to vector<16x1xf32>
    %143 = arith.divf %141, %142 : vector<16x1xf32>
    %144 = vector.broadcast %143 : vector<16x1xf32> to vector<16x32xf32>
    %145 = arith.subf %137, %144 : vector<16x32xf32>
    %146 = arith.mulf %145, %145 : vector<16x32xf32>
    %cst_57 = arith.constant dense<0.000000e+00> : vector<16xf32>
    %147 = vector.multi_reduction <add>, %146, %cst_57 [1] : vector<16x32xf32> to vector<16xf32>
    %148 = vector.shape_cast %147 : vector<16xf32> to vector<16x1xf32>
    %cst_58 = arith.constant 3.200000e+01 : f32
    %149 = vector.broadcast %cst_58 : f32 to vector<16x1xf32>
    %150 = arith.divf %148, %149 : vector<16x1xf32>
    %cst_59 = arith.constant 9.99999974E-6 : f32
    %151 = vector.broadcast %cst_59 : f32 to vector<16x1xf32>
    %152 = arith.addf %150, %151 : vector<16x1xf32>
    %153 = math.rsqrt %152 : vector<16x1xf32>
    %154 = vector.broadcast %153 : vector<16x1xf32> to vector<16x32xf32>
    %155 = arith.mulf %145, %154 : vector<16x32xf32>
    %156 = vector.broadcast %138 : vector<1x32xf32> to vector<16x32xf32>
    %157 = arith.mulf %155, %156 : vector<16x32xf32>
    %158 = vector.broadcast %139 : vector<1x32xf32> to vector<16x32xf32>
    %159 = arith.addf %157, %158 : vector<16x32xf32>
    %c0_60 = arith.constant 0 : index
    %c0_61 = arith.constant 0 : index
    %160 = vector.load %arg12[%c0_60, %c0_61] : memref<32x128xbf16, #tpu.memory_space<vmem>>, vector<32x128xbf16>
    %c0_62 = arith.constant 0 : index
    %c0_63 = arith.constant 0 : index
    %161 = vector.load %arg13[%c0_62, %c0_63] : memref<1x128xf32, #tpu.memory_space<vmem>>, vector<1x128xf32>
    %162 = arith.truncf %159 : vector<16x32xf32> to vector<16x32xbf16>
    %cst_64 = arith.constant dense<0.000000e+00> : vector<16x128xf32>
    %163 = tpu.matmul %162, %160, %cst_64 {dimension_numbers = #tpu.dot_dimension_numbers<[1], [0], [0], [1], [0, 0, 1, 1], [], []>} : vector<16x32xbf16>, vector<32x128xbf16>, vector<16x128xf32> -> vector<16x128xf32>
    %164 = vector.broadcast %161 : vector<1x128xf32> to vector<16x128xf32>
    %165 = arith.addf %163, %164 : vector<16x128xf32>
    %cst_65 = arith.constant 1.702000e+00 : f32
    %166 = vector.broadcast %cst_65 : f32 to vector<16x128xf32>
    %167 = arith.mulf %166, %165 : vector<16x128xf32>
    %168 = arith.negf %167 : vector<16x128xf32>
    %169 = math.exp %168 : vector<16x128xf32>
    %cst_66 = arith.constant 1.000000e+00 : f32
    %170 = vector.broadcast %cst_66 : f32 to vector<16x128xf32>
    %171 = arith.addf %170, %169 : vector<16x128xf32>
    %172 = arith.divf %170, %171 : vector<16x128xf32>
    %173 = arith.mulf %165, %172 : vector<16x128xf32>
    %c0_67 = arith.constant 0 : index
    %c0_68 = arith.constant 0 : index
    %174 = vector.load %arg14[%c0_67, %c0_68] : memref<128x32xbf16, #tpu.memory_space<vmem>>, vector<128x32xbf16>
    %c0_69 = arith.constant 0 : index
    %c0_70 = arith.constant 0 : index
    %175 = vector.load %arg15[%c0_69, %c0_70] : memref<1x32xf32, #tpu.memory_space<vmem>>, vector<1x32xf32>
    %176 = arith.truncf %173 : vector<16x128xf32> to vector<16x128xbf16>
    %cst_71 = arith.constant dense<0.000000e+00> : vector<16x32xf32>
    %177 = tpu.matmul %176, %174, %cst_71 {dimension_numbers = #tpu.dot_dimension_numbers<[1], [0], [0], [1], [0, 0, 1, 1], [], []>} : vector<16x128xbf16>, vector<128x32xbf16>, vector<16x32xf32> -> vector<16x32xf32>
    %178 = vector.broadcast %175 : vector<1x32xf32> to vector<16x32xf32>
    %179 = arith.addf %177, %178 : vector<16x32xf32>
    %180 = arith.addf %137, %179 : vector<16x32xf32>
    %c0_72 = arith.constant 0 : index
    %c0_73 = arith.constant 0 : index
    %181 = vector.load %arg16[%c0_72, %c0_73] : memref<1x32xf32, #tpu.memory_space<vmem>>, vector<1x32xf32>
    %c0_74 = arith.constant 0 : index
    %c0_75 = arith.constant 0 : index
    %182 = vector.load %arg17[%c0_74, %c0_75] : memref<1x32xf32, #tpu.memory_space<vmem>>, vector<1x32xf32>
    %cst_76 = arith.constant dense<0.000000e+00> : vector<16xf32>
    %183 = vector.multi_reduction <add>, %180, %cst_76 [1] : vector<16x32xf32> to vector<16xf32>
    %184 = vector.shape_cast %183 : vector<16xf32> to vector<16x1xf32>
    %cst_77 = arith.constant 3.200000e+01 : f32
    %185 = vector.broadcast %cst_77 : f32 to vector<16x1xf32>
    %186 = arith.divf %184, %185 : vector<16x1xf32>
    %187 = vector.broadcast %186 : vector<16x1xf32> to vector<16x32xf32>
    %188 = arith.subf %180, %187 : vector<16x32xf32>
    %189 = arith.mulf %188, %188 : vector<16x32xf32>
    %cst_78 = arith.constant dense<0.000000e+00> : vector<16xf32>
    %190 = vector.multi_reduction <add>, %189, %cst_78 [1] : vector<16x32xf32> to vector<16xf32>
    %191 = vector.shape_cast %190 : vector<16xf32> to vector<16x1xf32>
    %cst_79 = arith.constant 3.200000e+01 : f32
    %192 = vector.broadcast %cst_79 : f32 to vector<16x1xf32>
    %193 = arith.divf %191, %192 : vector<16x1xf32>
    %cst_80 = arith.constant 9.99999974E-6 : f32
    %194 = vector.broadcast %cst_80 : f32 to vector<16x1xf32>
    %195 = arith.addf %193, %194 : vector<16x1xf32>
    %196 = math.rsqrt %195 : vector<16x1xf32>
    %197 = vector.broadcast %196 : vector<16x1xf32> to vector<16x32xf32>
    %198 = arith.mulf %188, %197 : vector<16x32xf32>
    %199 = vector.broadcast %181 : vector<1x32xf32> to vector<16x32xf32>
    %200 = arith.mulf %198, %199 : vector<16x32xf32>
    %201 = vector.broadcast %182 : vector<1x32xf32> to vector<16x32xf32>
    %202 = arith.addf %200, %201 : vector<16x32xf32>
    %203 = arith.index_cast %arg0 : i32 to index
    %204 = memref.load %arg1[%203] : memref<4xi32, #tpu.memory_space<smem>>
    %205 = tpu.iota {dimensions = array<i32: 0>} : vector<16x1xi32>
    %206 = vector.broadcast %204 : i32 to vector<16x1xi32>
    %207 = arith.cmpi eq, %205, %206 : vector<16x1xi32>
    %208 = arith.extui %207 : vector<16x1xi1> to vector<16x1xi32>
    %209 = arith.sitofp %208 : vector<16x1xi32> to vector<16x1xf32>
    %210 = vector.broadcast %209 : vector<16x1xf32> to vector<16x32xf32>
    %211 = arith.mulf %202, %210 : vector<16x32xf32>
    %cst_81 = arith.constant dense<0.000000e+00> : vector<32xf32>
    %212 = vector.multi_reduction <add>, %211, %cst_81 [0] : vector<16x32xf32> to vector<32xf32>
    %213 = vector.shape_cast %212 : vector<32xf32> to vector<1x32xf32>
    %c0_82 = arith.constant 0 : index
    %c0_83 = arith.constant 0 : index
    %214 = vector.load %arg18[%c0_82, %c0_83] : memref<32x32xbf16, #tpu.memory_space<vmem>>, vector<32x32xbf16>
    %215 = arith.truncf %213 : vector<1x32xf32> to vector<1x32xbf16>
    %cst_84 = arith.constant dense<0.000000e+00> : vector<1x32xf32>
    %216 = tpu.matmul %215, %214, %cst_84 {dimension_numbers = #tpu.dot_dimension_numbers<[1], [0], [0], [1], [0, 0, 1, 1], [], []>} : vector<1x32xbf16>, vector<32x32xbf16>, vector<1x32xf32> -> vector<1x32xf32>
    %c0_85 = arith.constant 0 : index
    %c0_86 = arith.constant 0 : index
    %c0_87 = arith.constant 0 : index
    %217 = vector.load %arg19[%c0_85, %c0_86, %c0_87] : memref<1x1x32xf32, #tpu.memory_space<vmem>>, vector<1x1x32xf32>
    %218 = vector.shape_cast %217 : vector<1x1x32xf32> to vector<1x32xf32>
    %219 = vector.shape_cast %216 : vector<1x32xf32> to vector<1x1x32xf32>
    tpu.vector_store %arg19[%c0_85, %c0_86, %c0_87], %219 {strides = array<i32>} : memref<1x1x32xf32, #tpu.memory_space<vmem>>, vector<1x1x32xf32>,
    return
  }
  func.func @transform_0(%arg0: i32) -> i32 {
    %c0_i32 = arith.constant 0 : i32
    %c0_i32_0 = arith.constant 0 : i32
    return %c0_i32 : i32
  }
  func.func @transform_1(%arg0: i32) -> (i32, i32, i32) {
    %c0_i32 = arith.constant 0 : i32
    %c0_i32_0 = arith.constant 0 : i32
    %c0_i32_1 = arith.constant 0 : i32
    return %arg0, %c0_i32, %c0_i32_0 : i32, i32, i32
  }
  func.func @transform_2(%arg0: i32) -> (i32, i32) {
    %c0_i32 = arith.constant 0 : i32
    %c0_i32_0 = arith.constant 0 : i32
    %c0_i32_1 = arith.constant 0 : i32
    return %c0_i32, %c0_i32_0 : i32, i32
  }
  func.func @transform_3(%arg0: i32) -> (i32, i32) {
    %c0_i32 = arith.constant 0 : i32
    %c0_i32_0 = arith.constant 0 : i32
    %c0_i32_1 = arith.constant 0 : i32
    return %c0_i32, %c0_i32_0 : i32, i32
  }
  func.func @transform_4(%arg0: i32) -> (i32, i32) {
    %c0_i32 = arith.constant 0 : i32
    %c0_i32_0 = arith.constant 0 : i32
    %c0_i32_1 = arith.constant 0 : i32
    return %c0_i32, %c0_i32_0 : i32, i32
  }
  func.func @transform_5(%arg0: i32) -> (i32, i32) {
    %c0_i32 = arith.constant 0 : i32
    %c0_i32_0 = arith.constant 0 : i32
    %c0_i32_1 = arith.constant 0 : i32
    return %c0_i32, %c0_i32_0 : i32, i32
  }
  func.func @transform_6(%arg0: i32) -> (i32, i32) {
    %c0_i32 = arith.constant 0 : i32
    %c0_i32_0 = arith.constant 0 : i32
    %c0_i32_1 = arith.constant 0 : i32
    return %c0_i32, %c0_i32_0 : i32, i32
  }
  func.func @transform_7(%arg0: i32) -> (i32, i32) {
    %c0_i32 = arith.constant 0 : i32
    %c0_i32_0 = arith.constant 0 : i32
    %c0_i32_1 = arith.constant 0 : i32
    return %c0_i32, %c0_i32_0 : i32, i32
  }
  func.func @transform_8(%arg0: i32) -> (i32, i32) {
    %c0_i32 = arith.constant 0 : i32
    %c0_i32_0 = arith.constant 0 : i32
    %c0_i32_1 = arith.constant 0 : i32
    return %c0_i32, %c0_i32_0 : i32, i32
  }
  func.func @transform_9(%arg0: i32) -> (i32, i32) {
    %c0_i32 = arith.constant 0 : i32
    %c0_i32_0 = arith.constant 0 : i32
    %c0_i32_1 = arith.constant 0 : i32
    return %c0_i32, %c0_i32_0 : i32, i32
  }
  func.func @transform_10(%arg0: i32) -> (i32, i32) {
    %c0_i32 = arith.constant 0 : i32
    %c0_i32_0 = arith.constant 0 : i32
    %c0_i32_1 = arith.constant 0 : i32
    return %c0_i32, %c0_i32_0 : i32, i32
  }
  func.func @transform_11(%arg0: i32) -> (i32, i32) {
    %c0_i32 = arith.constant 0 : i32
    %c0_i32_0 = arith.constant 0 : i32
    %c0_i32_1 = arith.constant 0 : i32
    return %c0_i32, %c0_i32_0 : i32, i32
  }
  func.func @transform_12(%arg0: i32) -> (i32, i32) {
    %c0_i32 = arith.constant 0 : i32
    %c0_i32_0 = arith.constant 0 : i32
    %c0_i32_1 = arith.constant 0 : i32
    return %c0_i32, %c0_i32_0 : i32, i32
  }
  func.func @transform_13(%arg0: i32) -> (i32, i32) {
    %c0_i32 = arith.constant 0 : i32
    %c0_i32_0 = arith.constant 0 : i32
    %c0_i32_1 = arith.constant 0 : i32
    return %c0_i32, %c0_i32_0 : i32, i32
  }
  func.func @transform_14(%arg0: i32) -> (i32, i32) {
    %c0_i32 = arith.constant 0 : i32
    %c0_i32_0 = arith.constant 0 : i32
    %c0_i32_1 = arith.constant 0 : i32
    return %c0_i32, %c0_i32_0 : i32, i32
  }
  func.func @transform_15(%arg0: i32) -> (i32, i32) {
    %c0_i32 = arith.constant 0 : i32
    %c0_i32_0 = arith.constant 0 : i32
    %c0_i32_1 = arith.constant 0 : i32
    return %c0_i32, %c0_i32_0 : i32, i32
  }
  func.func @transform_16(%arg0: i32) -> (i32, i32) {
    %c0_i32 = arith.constant 0 : i32
    %c0_i32_0 = arith.constant 0 : i32
    %c0_i32_1 = arith.constant 0 : i32
    return %c0_i32, %c0_i32_0 : i32, i32
  }
  func.func @transform_17(%arg0: i32) -> (i32, i32) {
    %c0_i32 = arith.constant 0 : i32
    %c0_i32_0 = arith.constant 0 : i32
    %c0_i32_1 = arith.constant 0 : i32
    return %c0_i32, %c0_i32_0 : i32, i32
  }
  func.func @transform_18(%arg0: i32) -> (i32, i32, i32) {
    %c0_i32 = arith.constant 0 : i32
    %c0_i32_0 = arith.constant 0 : i32
    %c0_i32_1 = arith.constant 0 : i32
    return %arg0, %c0_i32, %c0_i32_0 : i32, i32, i32
  }
}

</mosaic_0001>

<llo_original>
// kernel: _lambda_.5
$region0: #{_lambda_.5}
  #allocation0 [shape = 'u32[]', space=smem, size = 0x4, offset = 0x4, fixed_abs, tag = 'smem constant byte address 0x4 - core index']
  #allocation1 [shape = 'u32[72,128]{1,0:T(1,128)}', space=vmem, size = 0x9000, scoped, tag = 'internal scratch']
  #allocation2 [shape = 'f32[1]{0:T(128)S(6)}', space=smem, size = 0x200, scoped, tag = 'scoped memory for _lambda_.5']
  %s0 = inlined_call_operand.vmem [shape: f32[2,32], index: 0, kind: input, shape index: {}]
  %s1 = inlined_call_operand.vmem [shape: f32[4,32], index: 1, kind: input, shape index: {}]
  %s2 = inlined_call_operand.<no memory space> [shape: f32[1], index: 2, kind: input, shape index: {}]
  %s3 = inlined_call_operand.hbm [shape: f32[2,4], index: 3, kind: output, shape index: {}]
  %s4 = sld [smem:[#allocation0]]
  $region22: #{_lambda_.5} parent=0
    _
  %s6 = ssub.s32 1, %s4
  %s7 = scalar_select 0, %s6, %s4
  %8 = sst [smem:[#allocation2]] %s2
  $region1: #{_lambda_.5} parent=0
    #allocation3 [shape = 'u8[1024]{0}', space=vmem, size = 0x400, scoped, tag = 'output window, operand 0, single buffered']
    #allocation4 [shape = 's32[1]{0}', space=sflag, size = 0x4, scoped, tag = 'scoped memory for _lambda_.5']
    %9 = vsyncpa [#allocation4], 0
    // Predicated region
    $region2: #{_lambda_.5} parent=1 // pred_check
      _
    $region3: #{_lambda_.5} parent=1 // pred_check_branch
      %11 = sbr.rel (0) target = $region5
    $region4: #{_lambda_.5} parent=1 // pred_region
      _
    $region5: #{_lambda_.5} parent=1 // pred_fallthru
      _
    // Predicated region
    $region6: #{_lambda_.5} parent=1 // pred_check
      _
    $region7: #{_lambda_.5} parent=1 // pred_check_branch
      %13 = sbr.rel (0) target = $region9
    $region8: #{_lambda_.5} parent=1 // pred_region
      _
    $region9: #{_lambda_.5} parent=1 // pred_fallthru
      _
    // Predicated region
    $region10: #{_lambda_.5} parent=1 // pred_check
      _
    $region11: #{_lambda_.5} parent=1 // pred_check_branch
      %15 = sbr.rel (0) target = $region13
    $region12: #{_lambda_.5} parent=1 // pred_region
      _
    $region13: #{_lambda_.5} parent=1 // pred_fallthru
      _
    %v17 = vld [vmem:[%s0] sm:$0x3]
    %v18 = vld [vmem:[%s1] sm:$0xf]
    %v19 = vmul.f32 %v17, %v17
    %vm20 = vcmask 254976
    %v21 = vsel %vm20, %v19, 0.0
    %22 = vadd.xlane.f32.xlu0 %v21
    %v23 = vpop.xlane.xlu0 %22
    %v24 = vrsqrt.pop %v23
    %v25 = vmul.f32 %v24, %v23
    %v26 = vmul.f32 %v25, %v24
    %v27 = vmul.f32 0.5, %v26
    %v28 = vsub.f32 1.5, %v27
    %v29 = vmul.f32 %v24, %v28
    %vm30 = vweird.f32 %v23
    %vm31 = vweird.f32 %v24
    %vm32 = vmor %vm30, %vm31
    %v33 = vsel %vm32, %v24, %v29
    %v34 = vmul.f32 %v17, %v33
    %v35 = vmul.f32 %v18, %v18
    %vm36 = vcmask 257024
    %v37 = vsel %vm36, %v35, 0.0
    %38 = vadd.xlane.f32.xlu0 %v37
    %v39 = vpop.xlane.xlu0 %38
    %v40 = vrsqrt.pop %v39
    %v41 = vmul.f32 %v40, %v39
    %v42 = vmul.f32 %v41, %v40
    %v43 = vmul.f32 0.5, %v42
    %v44 = vsub.f32 1.5, %v43
    %v45 = vmul.f32 %v40, %v44
    %vm46 = vweird.f32 %v39
    %vm47 = vweird.f32 %v40
    %vm48 = vmor %vm46, %vm47
    %v49 = vsel %vm48, %v40, %v45
    %v50 = vmul.f32 %v18, %v49
    %v51 = vpack.c.bf16 %v34, %v34
    %v52 = vpack.c.bf16 %v50, %v50
    %vm53 = vcmask 261120
    %v55 = vsel %vm53, %v51, 0
    %v58 = vsel %vm53, %v52, 0
    %60 = vmatpush.bf16.xpose.msra.mxu0 0
    %61 = vmatpush.bf16.xpose.msra.mxu0 0
    %62 = vmatpush.bf16.xpose.msra.mxu0 0
    %63 = vmatpush.bf16.xpose.msra.mxu0 0
    %64 = vmatpush.bf16.xpose.msra.mxu0 0
    %65 = vmatpush.bf16.xpose.msra.mxu0 0
    %66 = vmatpush.bf16.xpose.msra.mxu0 0
    %67 = vmatpush.bf16.xpose.msra.mxu0 %v58
    %68 = vmatmul.bf16.gmra.mxu0 %v55
    %v69 = vpop.f32.mrf.mxu0
    %v70 = vadd.f32 0.0, %v69
    %v71 = vpop.f32.mrf.mxu0
    %72 = vdwg.mxu0
    %s73 = sld [smem:[#allocation2]]
    %v74 = vstv %s73
    %v75 = vmul.f32 %v74, 1.442695
    %v76 = vpow.pop %v75
    %s77 = vtos %v76
    %v78 = vstv %s77
    %v79 = vmul.f32 %v78, %v70
    %vm80 = vcmask 25600
    %81 = vst.msk [vmem:[#allocation3] sm:$0x3] %vm80, %v79
    // Predicated region
    $region14: #{_lambda_.5} parent=1 // pred_check
      _
    $region15: #{_lambda_.5} parent=1 // pred_check_branch
      %83 = sbr.rel (0) target = $region17
    $region16: #{_lambda_.5} parent=1 // pred_region
      %85 = vsyncadd [#allocation4], 0
      %s87 = sshll.u32 [#allocation3], 4
      %s88 = int_to_ptr.vmem [resolvable:$true] %s87
      %s89 = sshll.u32 %s3, 4
      %s90 = int_to_ptr.hbm [resolvable:$true] %s89
      %92 = dma.vmem_to_hbm [thread:$0]  %s88, 32, %s90, [#allocation4]
    $region17: #{_lambda_.5} parent=1 // pred_fallthru
      _
    // Predicated region
    $region18: #{_lambda_.5} parent=1 // pred_check
      _
    $region19: #{_lambda_.5} parent=1 // pred_check_branch
      %94 = sbr.rel (0) target = $region21
    $region20: #{_lambda_.5} parent=1 // pred_region
      %96 = dma.done [#allocation4], 32
    $region21: #{_lambda_.5} parent=1 // pred_fallthru
      _
    %97 = vsyncpa [#allocation4], 1

// kernel: _lambda_.3
$region0: #{_lambda_.3}
  #allocation0 [shape = 'u32[]', space=smem, size = 0x4, offset = 0x4, fixed_abs, tag = 'smem constant byte address 0x4 - core index']
  #allocation1 [shape = 'u32[72,128]{1,0:T(1,128)}', space=vmem, size = 0x9000, scoped, tag = 'internal scratch']
  %s0 = inlined_call_operand.vmem [shape: s32[2], index: 0, kind: input, shape index: {}]
  %s1 = inlined_call_operand.vmem [shape: bf16[16,16], index: 1, kind: input, shape index: {}]
  %s2 = inlined_call_operand.vmem [shape: bf16[16,32], index: 2, kind: input, shape index: {}]
  %s3 = inlined_call_operand.vmem [shape: bf16[32,32], index: 3, kind: input, shape index: {}]
  %s4 = inlined_call_operand.vmem [shape: f32[1,32], index: 4, kind: input, shape index: {}]
  %s5 = inlined_call_operand.vmem [shape: bf16[32,32], index: 5, kind: input, shape index: {}]
  %s6 = inlined_call_operand.vmem [shape: f32[1,32], index: 6, kind: input, shape index: {}]
  %s7 = inlined_call_operand.vmem [shape: f32[2,32], index: 7, kind: output, shape index: {}]
  %s8 = sld [smem:[#allocation0]]
  $region42: #{_lambda_.3} parent=0
    _
  %s10 = ssub.s32 1, %s8
  %s11 = scalar_select 0, %s10, %s8
  $region1: #{_lambda_.3} parent=0
    #allocation2 [shape = 'u8[512]{0}', space=smem, size = 0x200, scoped, tag = 'input window, operand 0, single buffered']
    #allocation3 [shape = 's32[1]{0}', space=sflag, size = 0x4, scoped, tag = 'scoped memory for _lambda_.3']
    %12 = vsyncpa [#allocation3], 0
    // Predicated region
    $region2: #{_lambda_.3} parent=1 // pred_check
      _
    $region3: #{_lambda_.3} parent=1 // pred_check_branch
      %14 = sbr.rel (0) target = $region5
    $region4: #{_lambda_.3} parent=1 // pred_region
      %16 = vsyncadd [#allocation3], 0
      %s18 = sshll.u32 %s0, 4
      %s19 = int_to_ptr.vmem [resolvable:$true] %s18
      %21 = dma.vmem_to_smem %s19, 16, [#allocation2], [#allocation3]
    $region5: #{_lambda_.3} parent=1 // pred_fallthru
      _
    // Predicated region
    $region6: #{_lambda_.3} parent=1 // pred_check
      _
    $region7: #{_lambda_.3} parent=1 // pred_check_branch
      %23 = sbr.rel (0) target = $region9
    $region8: #{_lambda_.3} parent=1 // pred_region
      _
    $region9: #{_lambda_.3} parent=1 // pred_fallthru
      _
    // Predicated region
    $region10: #{_lambda_.3} parent=1 // pred_check
      _
    $region11: #{_lambda_.3} parent=1 // pred_check_branch
      %25 = sbr.rel (0) target = $region13
    $region12: #{_lambda_.3} parent=1 // pred_region
      _
    $region13: #{_lambda_.3} parent=1 // pred_fallthru
      _
    // Predicated region
    $region14: #{_lambda_.3} parent=1 // pred_check
      _
    $region15: #{_lambda_.3} parent=1 // pred_check_branch
      %27 = sbr.rel (0) target = $region17
    $region16: #{_lambda_.3} parent=1 // pred_region
      _
    $region17: #{_lambda_.3} parent=1 // pred_fallthru
      _
    // Predicated region
    $region18: #{_lambda_.3} parent=1 // pred_check
      _
    $region19: #{_lambda_.3} parent=1 // pred_check_branch
      %29 = sbr.rel (0) target = $region21
    $region20: #{_lambda_.3} parent=1 // pred_region
      _
    $region21: #{_lambda_.3} parent=1 // pred_fallthru
      _
    // Predicated region
    $region22: #{_lambda_.3} parent=1 // pred_check
      _
    $region23: #{_lambda_.3} parent=1 // pred_check_branch
      %31 = sbr.rel (0) target = $region25
    $region24: #{_lambda_.3} parent=1 // pred_region
      _
    $region25: #{_lambda_.3} parent=1 // pred_fallthru
      _
    // Predicated region
    $region26: #{_lambda_.3} parent=1 // pred_check
      _
    $region27: #{_lambda_.3} parent=1 // pred_check_branch
      %33 = sbr.rel (0) target = $region29
    $region28: #{_lambda_.3} parent=1 // pred_region
      _
    $region29: #{_lambda_.3} parent=1 // pred_fallthru
      _
    // Predicated region
    $region30: #{_lambda_.3} parent=1 // pred_check
      _
    $region31: #{_lambda_.3} parent=1 // pred_check_branch
      %35 = sbr.rel (0) target = $region33
    $region32: #{_lambda_.3} parent=1 // pred_region
      %37 = dma.done [#allocation3], 16
    $region33: #{_lambda_.3} parent=1 // pred_fallthru
      _
    %38 = sfence
    %v40 = vld [vmem:[%s1] sm:$0xf]
    %v41 = vld [vmem:[%s1 + $0x4] sm:$0xf]
    %v42 = vld [vmem:[%s2] sm:$0xf]
    %v43 = vld [vmem:[%s2 + $0x4] sm:$0xf]
    %v44 = vld [vmem:[%s3] sm:$0xf]
    %v45 = vld [vmem:[%s3 + $0x4] sm:$0xf]
    %v46 = vld [vmem:[%s3 + $0x8] sm:$0xf]
    %v47 = vld [vmem:[%s3 + $0xc] sm:$0xf]
    %v50 = vunpack.c.l.b16 %v42
    %v51 = vunpack.c.l.b16 %v43
    %v52 = vpack.c.b16 %v51, %v50
    %v57 = vunpack.c.l.b16 %v44
    %v58 = vunpack.c.l.b16 %v45
    %v59 = vunpack.c.l.b16 %v46
    %v60 = vunpack.c.l.b16 %v47
    %v61 = vpack.c.b16 %v58, %v57
    %v62 = vpack.c.b16 %v60, %v59
    %vm65 = vcmask 261120
    %v67 = vsel %vm65, %v52, 0
    %69 = vmatpush.bf16.msra.mxu0 0
    %70 = vmatpush.bf16.msra.mxu0 0
    %71 = vmatpush.bf16.msra.mxu0 0
    %72 = vmatpush.bf16.msra.mxu0 0
    %73 = vmatpush.bf16.msra.mxu0 0
    %74 = vmatpush.bf16.msra.mxu0 0
    %75 = vmatpush.bf16.msra.mxu0 %v62
    %76 = vmatpush.bf16.msra.mxu0 %v61
    %77 = vmatmul.bf16.gmra.mxu0 %v67
    %v78 = vpop.f32.mrf.mxu0
    %v79 = vadd.f32 0.0, %v78
    %v80 = vpop.f32.mrf.mxu0
    %v81 = vadd.f32 0.0, %v80
    %82 = vdwg.mxu0
    %v83 = vpack.c.bf16 %v81, %v79
    %v84 = vld [vmem:[%s4] sm:$0x1]
    %v86 = vperm.slane %v84, 0
    %v90 = vunpack.c.l.b16 %v40
    %v91 = vunpack.c.l.b16 %v41
    %v92 = vpack.c.b16 %v91, %v90
    %vm93 = vcmask 130048
    %v95 = vsel %vm93, %v92, 0
    %97 = vmatpush.bf16.msra.mxu0 0
    %98 = vmatpush.bf16.msra.mxu0 0
    %99 = vmatpush.bf16.msra.mxu0 0
    %100 = vmatpush.bf16.msra.mxu0 0
    %101 = vmatpush.bf16.msra.mxu0 0
    %102 = vmatpush.bf16.msra.mxu0 0
    %103 = vmatpush.bf16.msra.mxu0 0
    %104 = vmatpush.bf16.msra.mxu0 %v83
    %105 = vmatmul.bf16.gmra.mxu0 %v95
    %v106 = vpop.f32.mrf.mxu0
    %v107 = vadd.f32 %v86, %v106
    %v108 = vpop.f32.mrf.mxu0
    %v109 = vadd.f32 %v86, %v108
    %110 = vdwg.mxu0
    %v111 = vmax.f32 %v107, 0.0
    %v112 = vmax.f32 %v109, 0.0
    %v113 = vld [vmem:[%s5] sm:$0xf]
    %v114 = vld [vmem:[%s5 + $0x4] sm:$0xf]
    %v115 = vld [vmem:[%s5 + $0x8] sm:$0xf]
    %v116 = vld [vmem:[%s5 + $0xc] sm:$0xf]
    %v117 = vpack.c.bf16 %v112, %v111
    %v122 = vunpack.c.l.b16 %v113
    %v123 = vunpack.c.l.b16 %v114
    %v124 = vunpack.c.l.b16 %v115
    %v125 = vunpack.c.l.b16 %v116
    %v126 = vpack.c.b16 %v123, %v122
    %v127 = vpack.c.b16 %v125, %v124
    %v131 = vsel %vm65, %v117, 0
    %133 = vmatpush.bf16.msra.mxu0 0
    %134 = vmatpush.bf16.msra.mxu0 0
    %135 = vmatpush.bf16.msra.mxu0 0
    %136 = vmatpush.bf16.msra.mxu0 0
    %137 = vmatpush.bf16.msra.mxu0 0
    %138 = vmatpush.bf16.msra.mxu0 0
    %139 = vmatpush.bf16.msra.mxu0 %v127
    %140 = vmatpush.bf16.msra.mxu0 %v126
    %141 = vmatmul.bf16.gmra.mxu0 %v131
    %v142 = vpop.f32.mrf.mxu0
    %v143 = vadd.f32 0.0, %v142
    %v144 = vpop.f32.mrf.mxu0
    %v145 = vadd.f32 0.0, %v144
    %146 = vdwg.mxu0
    %v147 = vpack.c.bf16 %v145, %v143
    %v148 = vld [vmem:[%s6] sm:$0x1]
    %v150 = vperm.slane %v148, 0
    %152 = vmatpush.bf16.msra.mxu0 0
    %153 = vmatpush.bf16.msra.mxu0 0
    %154 = vmatpush.bf16.msra.mxu0 0
    %155 = vmatpush.bf16.msra.mxu0 0
    %156 = vmatpush.bf16.msra.mxu0 0
    %157 = vmatpush.bf16.msra.mxu0 0
    %158 = vmatpush.bf16.msra.mxu0 0
    %159 = vmatpush.bf16.msra.mxu0 %v147
    %160 = vmatmul.bf16.gmra.mxu0 %v95
    %v161 = vpop.f32.mrf.mxu0
    %v162 = vadd.f32 %v150, %v161
    %v163 = vpop.f32.mrf.mxu0
    %v164 = vadd.f32 %v150, %v163
    %165 = vdwg.mxu0
    %v166 = vlaneseq
    %v167 = vshrl.u32 %v166, 7
    %v168 = vadd.s32 %v167, 8
    %s169 = sld [smem:[#allocation2]]
    %v170 = vstv %s169
    %vm171 = vcmp.eq.s32.totalorder %v167, %v170
    %vm172 = vcmp.eq.s32.totalorder %v168, %v170
    %v173 = vsel %vm171, 1, 0
    %v174 = vsel %vm172, 1, 0
    %v175 = vcvt.s32.f32 %v173
    %v176 = vcvt.s32.f32 %v174
    %v177 = vmul.f32 %v162, %v175
    %v178 = vmul.f32 %v164, %v176
    %v179 = vsel %vm65, %v177, 0.0
    %v180 = vsel %vm65, %v178, 0.0
    %v181 = vadd.f32 %v179, %v180
    %v182 = vrot.slane %v181, 4
    %v183 = vadd.f32 %v181, %v182
    %v184 = vrot.slane %v183, 2
    %v185 = vadd.f32 %v183, %v184
    %v186 = vrot.slane %v185, 1
    %v187 = vadd.f32 %v185, %v186
    %vm188 = vcmask 253952
    %189 = vst.msk [vmem:[%s7] sm:$0x1] %vm188, %v187
    %s190 = sld [smem:[#allocation2 + $0x1]]
    %v191 = vstv %s190
    %vm192 = vcmp.eq.s32.totalorder %v167, %v191
    %vm193 = vcmp.eq.s32.totalorder %v168, %v191
    %v194 = vsel %vm192, 1, 0
    %v195 = vsel %vm193, 1, 0
    %v196 = vcvt.s32.f32 %v194
    %v197 = vcvt.s32.f32 %v195
    %v198 = vmul.f32 %v162, %v196
    %v199 = vmul.f32 %v164, %v197
    %v200 = vsel %vm65, %v198, 0.0
    %v201 = vsel %vm65, %v199, 0.0
    %v202 = vadd.f32 %v200, %v201
    %v203 = vrot.slane %v202, 4
    %v204 = vadd.f32 %v202, %v203
    %v205 = vrot.slane %v204, 2
    %v206 = vadd.f32 %v204, %v205
    %v207 = vrot.slane %v206, 1
    %v208 = vadd.f32 %v206, %v207
    %209 = vst.msk [vmem:[%s7 + $0x1] sm:$0x1] %vm188, %v208
    // Predicated region
    $region34: #{_lambda_.3} parent=1 // pred_check
      _
    $region35: #{_lambda_.3} parent=1 // pred_check_branch
      %211 = sbr.rel (0) target = $region37
    $region36: #{_lambda_.3} parent=1 // pred_region
      _
    $region37: #{_lambda_.3} parent=1 // pred_fallthru
      _
    // Predicated region
    $region38: #{_lambda_.3} parent=1 // pred_check
      _
    $region39: #{_lambda_.3} parent=1 // pred_check_branch
      %213 = sbr.rel (0) target = $region41
    $region40: #{_lambda_.3} parent=1 // pred_region
      _
    $region41: #{_lambda_.3} parent=1 // pred_fallthru
      _
    %214 = vsyncpa [#allocation3], 1

// kernel: _lambda_.4
$region0: #{_lambda_.4}
  #allocation0 [shape = 'u32[]', space=smem, size = 0x4, offset = 0x4, fixed_abs, tag = 'smem constant byte address 0x4 - core index']
  #allocation1 [shape = 'u32[72,128]{1,0:T(1,128)}', space=vmem, size = 0x9000, scoped, tag = 'internal scratch']
  #allocation2 [shape = 'f32[16,32]{1,0:T(8,128)}', space=vmem, size = 0x2000, scoped, tag = 'scratch operand']
  %s0 = inlined_call_operand.vmem [shape: s32[4], index: 0, kind: input, shape index: {}]
  %s1 = inlined_call_operand.vmem [shape: f32[4,16,32], index: 1, kind: input, shape index: {}]
  %s2 = inlined_call_operand.vmem [shape: f32[16,32], index: 2, kind: input, shape index: {}]
  %s3 = inlined_call_operand.vmem [shape: f32[1,32], index: 3, kind: input, shape index: {}]
  %s4 = inlined_call_operand.vmem [shape: f32[1,32], index: 4, kind: input, shape index: {}]
  %s5 = inlined_call_operand.vmem [shape: bf16[32,96], index: 5, kind: input, shape index: {}]
  %s6 = inlined_call_operand.vmem [shape: f32[1,96], index: 6, kind: input, shape index: {}]
  %s7 = inlined_call_operand.vmem [shape: bf16[32,32], index: 7, kind: input, shape index: {}]
  %s8 = inlined_call_operand.vmem [shape: f32[1,32], index: 8, kind: input, shape index: {}]
  %s9 = inlined_call_operand.vmem [shape: f32[1,32], index: 9, kind: input, shape index: {}]
  %s10 = inlined_call_operand.vmem [shape: f32[1,32], index: 10, kind: input, shape index: {}]
  %s11 = inlined_call_operand.vmem [shape: bf16[32,128], index: 11, kind: input, shape index: {}]
  %s12 = inlined_call_operand.vmem [shape: f32[1,128], index: 12, kind: input, shape index: {}]
  %s13 = inlined_call_operand.vmem [shape: bf16[128,32], index: 13, kind: input, shape index: {}]
  %s14 = inlined_call_operand.vmem [shape: f32[1,32], index: 14, kind: input, shape index: {}]
  %s15 = inlined_call_operand.vmem [shape: f32[1,32], index: 15, kind: input, shape index: {}]
  %s16 = inlined_call_operand.vmem [shape: f32[1,32], index: 16, kind: input, shape index: {}]
  %s17 = inlined_call_operand.vmem [shape: bf16[32,32], index: 17, kind: input, shape index: {}]
  %s18 = inlined_call_operand.vmem [shape: f32[4,1,32], index: 18, kind: output, shape index: {}]
  %s19 = sld [smem:[#allocation0]]
  $region109: #{_lambda_.4} parent=0
    _
  %s21 = ssub.s32 1, %s19
  %s22 = scalar_select 0, %s21, %s19
  $region1: #{_lambda_.4} parent=0
    #allocation3 [shape = 'u8[512]{0}', space=smem, size = 0x200, scoped, tag = 'input window, operand 0, single buffered']
    #allocation4 [shape = 's32[2]{0}', space=sflag, size = 0x8, scoped, tag = 'scoped memory for _lambda_.4']
    %23 = vsyncpa [#allocation4], 0
    loop: start=0, step=1, limit=6
    $region2: #{_lambda_.4} parent=1 // loop_pre_header
      _
    $region3: #{_lambda_.4} parent=1 // loop_header
      %s25 = sphi 0, %s29
      %p26 = scmp.ge.s32.totalorder %s25, 6
      %s33 = sphi 0, %s33
      %s35 = sphi 0, %s33
      %s36 = sphi 0, %s35
      %s50 = sphi 0, %s36
      %s56 = sphi 0, %s58
      %s59 = sphi 0, %s56
      %s60 = sphi 0, %s59
      %s76 = sphi 0, %s60
      %s80 = sphi 0, %s80
      %s82 = sphi 0, %s80
      %s83 = sphi 0, %s82
      %s97 = sphi 0, %s83
      %s101 = sphi 0, %s101
      %s103 = sphi 0, %s101
      %s104 = sphi 0, %s103
      %s118 = sphi 0, %s104
      %s122 = sphi 0, %s122
      %s124 = sphi 0, %s122
      %s125 = sphi 0, %s124
      %s139 = sphi 0, %s125
      %s143 = sphi 0, %s143
      %s145 = sphi 0, %s143
      %s146 = sphi 0, %s145
      %s160 = sphi 0, %s146
      %s164 = sphi 0, %s164
      %s166 = sphi 0, %s164
      %s167 = sphi 0, %s166
      %s181 = sphi 0, %s167
      %s185 = sphi 0, %s185
      %s187 = sphi 0, %s185
      %s188 = sphi 0, %s187
      %s202 = sphi 0, %s188
      %s206 = sphi 0, %s206
      %s208 = sphi 0, %s206
      %s209 = sphi 0, %s208
      %s223 = sphi 0, %s209
      %s227 = sphi 0, %s227
      %s229 = sphi 0, %s227
      %s230 = sphi 0, %s229
      %s244 = sphi 0, %s230
      %s248 = sphi 0, %s248
      %s250 = sphi 0, %s248
      %s251 = sphi 0, %s250
      %s265 = sphi 0, %s251
      %s269 = sphi 0, %s269
      %s271 = sphi 0, %s269
      %s272 = sphi 0, %s271
      %s286 = sphi 0, %s272
      %s290 = sphi 0, %s290
      %s292 = sphi 0, %s290
      %s293 = sphi 0, %s292
      %s307 = sphi 0, %s293
      %s311 = sphi 0, %s311
      %s313 = sphi 0, %s311
      %s314 = sphi 0, %s313
      %s328 = sphi 0, %s314
      %s332 = sphi 0, %s332
      %s334 = sphi 0, %s332
      %s335 = sphi 0, %s334
      %s349 = sphi 0, %s335
      %s353 = sphi 0, %s353
      %s355 = sphi 0, %s353
      %s356 = sphi 0, %s355
      %s370 = sphi 0, %s356
      %s374 = sphi 0, %s374
      %s376 = sphi 0, %s374
      %s377 = sphi 0, %s376
      %s391 = sphi 0, %s377
      %s395 = sphi 0, %s395
      %s397 = sphi 0, %s395
      %s398 = sphi 0, %s397
      %s412 = sphi 0, %s398
      %s418 = sphi 0, %s420
      %s421 = sphi 0, %s418
      %s422 = sphi 0, %s421
      %s438 = sphi 0, %s422
    $region4: #{_lambda_.4} parent=1 // loop_header_branch
      %28 = sbr.rel (%p26) target = $region8
    $region5: #{_lambda_.4} parent=1 // loop_body
      %s30 = ssub.s32 %s25, 1
      %s31 = ssub.s32 %s25, 2
      %s32 = sadd.s32 %s25, 1
      %s34 = sadd.s32 %s33, 1
      %p37 = scmp.eq.s32.totalorder %s25, 3
      %p38 = scmp.ne.s32.totalorder %s33, %s35
      %p39 = scmp.eq.s32.totalorder %s25, 0
      %p40 = por %p38, %p39
      %p41 = scmp.ne.s32.totalorder %s33, %s35
      %p42 = scmp.eq.s32.totalorder %s30, 3
      %p43 = por %p41, %p42
      %p44 = scmp.ne.s32.totalorder %s35, %s36
      %p45 = scmp.eq.s32.totalorder %s30, 0
      %p46 = por %p44, %p45
      %p47 = scmp.ne.s32.totalorder %s35, %s36
      %p48 = scmp.eq.s32.totalorder %s31, 3
      %p49 = por %p47, %p48
      %p51 = scmp.ne.s32.totalorder %s36, %s50
      %p52 = scmp.eq.s32.totalorder %s31, 0
      %p53 = por %p51, %p52
      %s54 = ssub.s32 %s25, %s32
      %p55 = scmp.eq.s32.totalorder %s54, 0
      %s57 = sadd.s32 %s56, 1
      %s58 = scalar_select %p55, %s56, %s57
      %p61 = pneg %p55
      %p62 = scmp.eq.s32.totalorder %s25, 3
      %p63 = por %p61, %p62
      %p64 = scmp.ne.s32.totalorder %s56, %s59
      %p65 = scmp.eq.s32.totalorder %s25, 0
      %p66 = por %p64, %p65
      %p67 = scmp.ne.s32.totalorder %s56, %s59
      %p68 = scmp.eq.s32.totalorder %s30, 3
      %p69 = por %p67, %p68
      %p70 = scmp.ne.s32.totalorder %s59, %s60
      %p71 = scmp.eq.s32.totalorder %s30, 0
      %p72 = por %p70, %p71
      %p73 = scmp.ne.s32.totalorder %s59, %s60
      %p74 = scmp.eq.s32.totalorder %s31, 3
      %p75 = por %p73, %p74
      %p77 = scmp.ne.s32.totalorder %s60, %s76
      %p78 = scmp.eq.s32.totalorder %s31, 0
      %p79 = por %p77, %p78
      %s81 = sadd.s32 %s80, 1
      %p84 = scmp.eq.s32.totalorder %s25, 3
      %p85 = scmp.ne.s32.totalorder %s80, %s82
      %p86 = scmp.eq.s32.totalorder %s25, 0
      %p87 = por %p85, %p86
      %p88 = scmp.ne.s32.totalorder %s80, %s82
      %p89 = scmp.eq.s32.totalorder %s30, 3
      %p90 = por %p88, %p89
      %p91 = scmp.ne.s32.totalorder %s82, %s83
      %p92 = scmp.eq.s32.totalorder %s30, 0
      %p93 = por %p91, %p92
      %p94 = scmp.ne.s32.totalorder %s82, %s83
      %p95 = scmp.eq.s32.totalorder %s31, 3
      %p96 = por %p94, %p95
      %p98 = scmp.ne.s32.totalorder %s83, %s97
      %p99 = scmp.eq.s32.totalorder %s31, 0
      %p100 = por %p98, %p99
      %s102 = sadd.s32 %s101, 1
      %p105 = scmp.eq.s32.totalorder %s25, 3
      %p106 = scmp.ne.s32.totalorder %s101, %s103
      %p107 = scmp.eq.s32.totalorder %s25, 0
      %p108 = por %p106, %p107
      %p109 = scmp.ne.s32.totalorder %s101, %s103
      %p110 = scmp.eq.s32.totalorder %s30, 3
      %p111 = por %p109, %p110
      %p112 = scmp.ne.s32.totalorder %s103, %s104
      %p113 = scmp.eq.s32.totalorder %s30, 0
      %p114 = por %p112, %p113
      %p115 = scmp.ne.s32.totalorder %s103, %s104
      %p116 = scmp.eq.s32.totalorder %s31, 3
      %p117 = por %p115, %p116
      %p119 = scmp.ne.s32.totalorder %s104, %s118
      %p120 = scmp.eq.s32.totalorder %s31, 0
      %p121 = por %p119, %p120
      %s123 = sadd.s32 %s122, 1
      %p126 = scmp.eq.s32.totalorder %s25, 3
      %p127 = scmp.ne.s32.totalorder %s122, %s124
      %p128 = scmp.eq.s32.totalorder %s25, 0
      %p129 = por %p127, %p128
      %p130 = scmp.ne.s32.totalorder %s122, %s124
      %p131 = scmp.eq.s32.totalorder %s30, 3
      %p132 = por %p130, %p131
      %p133 = scmp.ne.s32.totalorder %s124, %s125
      %p134 = scmp.eq.s32.totalorder %s30, 0
      %p135 = por %p133, %p134
      %p136 = scmp.ne.s32.totalorder %s124, %s125
      %p137 = scmp.eq.s32.totalorder %s31, 3
      %p138 = por %p136, %p137
      %p140 = scmp.ne.s32.totalorder %s125, %s139
      %p141 = scmp.eq.s32.totalorder %s31, 0
      %p142 = por %p140, %p141
      %s144 = sadd.s32 %s143, 1
      %p147 = scmp.eq.s32.totalorder %s25, 3
      %p148 = scmp.ne.s32.totalorder %s143, %s145
      %p149 = scmp.eq.s32.totalorder %s25, 0
      %p150 = por %p148, %p149
      %p151 = scmp.ne.s32.totalorder %s143, %s145
      %p152 = scmp.eq.s32.totalorder %s30, 3
      %p153 = por %p151, %p152
      %p154 = scmp.ne.s32.totalorder %s145, %s146
      %p155 = scmp.eq.s32.totalorder %s30, 0
      %p156 = por %p154, %p155
      %p157 = scmp.ne.s32.totalorder %s145, %s146
      %p158 = scmp.eq.s32.totalorder %s31, 3
      %p159 = por %p157, %p158
      %p161 = scmp.ne.s32.totalorder %s146, %s160
      %p162 = scmp.eq.s32.totalorder %s31, 0
      %p163 = por %p161, %p162
      %s165 = sadd.s32 %s164, 1
      %p168 = scmp.eq.s32.totalorder %s25, 3
      %p169 = scmp.ne.s32.totalorder %s164, %s166
      %p170 = scmp.eq.s32.totalorder %s25, 0
      %p171 = por %p169, %p170
      %p172 = scmp.ne.s32.totalorder %s164, %s166
      %p173 = scmp.eq.s32.totalorder %s30, 3
      %p174 = por %p172, %p173
      %p175 = scmp.ne.s32.totalorder %s166, %s167
      %p176 = scmp.eq.s32.totalorder %s30, 0
      %p177 = por %p175, %p176
      %p178 = scmp.ne.s32.totalorder %s166, %s167
      %p179 = scmp.eq.s32.totalorder %s31, 3
      %p180 = por %p178, %p179
      %p182 = scmp.ne.s32.totalorder %s167, %s181
      %p183 = scmp.eq.s32.totalorder %s31, 0
      %p184 = por %p182, %p183
      %s186 = sadd.s32 %s185, 1
      %p189 = scmp.eq.s32.totalorder %s25, 3
      %p190 = scmp.ne.s32.totalorder %s185, %s187
      %p191 = scmp.eq.s32.totalorder %s25, 0
      %p192 = por %p190, %p191
      %p193 = scmp.ne.s32.totalorder %s185, %s187
      %p194 = scmp.eq.s32.totalorder %s30, 3
      %p195 = por %p193, %p194
      %p196 = scmp.ne.s32.totalorder %s187, %s188
      %p197 = scmp.eq.s32.totalorder %s30, 0
      %p198 = por %p196, %p197
      %p199 = scmp.ne.s32.totalorder %s187, %s188
      %p200 = scmp.eq.s32.totalorder %s31, 3
      %p201 = por %p199, %p200
      %p203 = scmp.ne.s32.totalorder %s188, %s202
      %p204 = scmp.eq.s32.totalorder %s31, 0
      %p205 = por %p203, %p204
      %s207 = sadd.s32 %s206, 1
      %p210 = scmp.eq.s32.totalorder %s25, 3
      %p211 = scmp.ne.s32.totalorder %s206, %s208
      %p212 = scmp.eq.s32.totalorder %s25, 0
      %p213 = por %p211, %p212
      %p214 = scmp.ne.s32.totalorder %s206, %s208
      %p215 = scmp.eq.s32.totalorder %s30, 3
      %p216 = por %p214, %p215
      %p217 = scmp.ne.s32.totalorder %s208, %s209
      %p218 = scmp.eq.s32.totalorder %s30, 0
      %p219 = por %p217, %p218
      %p220 = scmp.ne.s32.totalorder %s208, %s209
      %p221 = scmp.eq.s32.totalorder %s31, 3
      %p222 = por %p220, %p221
      %p224 = scmp.ne.s32.totalorder %s209, %s223
      %p225 = scmp.eq.s32.totalorder %s31, 0
      %p226 = por %p224, %p225
      %s228 = sadd.s32 %s227, 1
      %p231 = scmp.eq.s32.totalorder %s25, 3
      %p232 = scmp.ne.s32.totalorder %s227, %s229
      %p233 = scmp.eq.s32.totalorder %s25, 0
      %p234 = por %p232, %p233
      %p235 = scmp.ne.s32.totalorder %s227, %s229
      %p236 = scmp.eq.s32.totalorder %s30, 3
      %p237 = por %p235, %p236
      %p238 = scmp.ne.s32.totalorder %s229, %s230
      %p239 = scmp.eq.s32.totalorder %s30, 0
      %p240 = por %p238, %p239
      %p241 = scmp.ne.s32.totalorder %s229, %s230
      %p242 = scmp.eq.s32.totalorder %s31, 3
      %p243 = por %p241, %p242
      %p245 = scmp.ne.s32.totalorder %s230, %s244
      %p246 = scmp.eq.s32.totalorder %s31, 0
      %p247 = por %p245, %p246
      %s249 = sadd.s32 %s248, 1
      %p252 = scmp.eq.s32.totalorder %s25, 3
      %p253 = scmp.ne.s32.totalorder %s248, %s250
      %p254 = scmp.eq.s32.totalorder %s25, 0
      %p255 = por %p253, %p254
      %p256 = scmp.ne.s32.totalorder %s248, %s250
      %p257 = scmp.eq.s32.totalorder %s30, 3
      %p258 = por %p256, %p257
      %p259 = scmp.ne.s32.totalorder %s250, %s251
      %p260 = scmp.eq.s32.totalorder %s30, 0
      %p261 = por %p259, %p260
      %p262 = scmp.ne.s32.totalorder %s250, %s251
      %p263 = scmp.eq.s32.totalorder %s31, 3
      %p264 = por %p262, %p263
      %p266 = scmp.ne.s32.totalorder %s251, %s265
      %p267 = scmp.eq.s32.totalorder %s31, 0
      %p268 = por %p266, %p267
      %s270 = sadd.s32 %s269, 1
      %p273 = scmp.eq.s32.totalorder %s25, 3
      %p274 = scmp.ne.s32.totalorder %s269, %s271
      %p275 = scmp.eq.s32.totalorder %s25, 0
      %p276 = por %p274, %p275
      %p277 = scmp.ne.s32.totalorder %s269, %s271
      %p278 = scmp.eq.s32.totalorder %s30, 3
      %p279 = por %p277, %p278
      %p280 = scmp.ne.s32.totalorder %s271, %s272
      %p281 = scmp.eq.s32.totalorder %s30, 0
      %p282 = por %p280, %p281
      %p283 = scmp.ne.s32.totalorder %s271, %s272
      %p284 = scmp.eq.s32.totalorder %s31, 3
      %p285 = por %p283, %p284
      %p287 = scmp.ne.s32.totalorder %s272, %s286
      %p288 = scmp.eq.s32.totalorder %s31, 0
      %p289 = por %p287, %p288
      %s291 = sadd.s32 %s290, 1
      %p294 = scmp.eq.s32.totalorder %s25, 3
      %p295 = scmp.ne.s32.totalorder %s290, %s292
      %p296 = scmp.eq.s32.totalorder %s25, 0
      %p297 = por %p295, %p296
      %p298 = scmp.ne.s32.totalorder %s290, %s292
      %p299 = scmp.eq.s32.totalorder %s30, 3
      %p300 = por %p298, %p299
      %p301 = scmp.ne.s32.totalorder %s292, %s293
      %p302 = scmp.eq.s32.totalorder %s30, 0
      %p303 = por %p301, %p302
      %p304 = scmp.ne.s32.totalorder %s292, %s293
      %p305 = scmp.eq.s32.totalorder %s31, 3
      %p306 = por %p304, %p305
      %p308 = scmp.ne.s32.totalorder %s293, %s307
      %p309 = scmp.eq.s32.totalorder %s31, 0
      %p310 = por %p308, %p309
      %s312 = sadd.s32 %s311, 1
      %p315 = scmp.eq.s32.totalorder %s25, 3
      %p316 = scmp.ne.s32.totalorder %s311, %s313
      %p317 = scmp.eq.s32.totalorder %s25, 0
      %p318 = por %p316, %p317
      %p319 = scmp.ne.s32.totalorder %s311, %s313
      %p320 = scmp.eq.s32.totalorder %s30, 3
      %p321 = por %p319, %p320
      %p322 = scmp.ne.s32.totalorder %s313, %s314
      %p323 = scmp.eq.s32.totalorder %s30, 0
      %p324 = por %p322, %p323
      %p325 = scmp.ne.s32.totalorder %s313, %s314
      %p326 = scmp.eq.s32.totalorder %s31, 3
      %p327 = por %p325, %p326
      %p329 = scmp.ne.s32.totalorder %s314, %s328
      %p330 = scmp.eq.s32.totalorder %s31, 0
      %p331 = por %p329, %p330
      %s333 = sadd.s32 %s332, 1
      %p336 = scmp.eq.s32.totalorder %s25, 3
      %p337 = scmp.ne.s32.totalorder %s332, %s334
      %p338 = scmp.eq.s32.totalorder %s25, 0
      %p339 = por %p337, %p338
      %p340 = scmp.ne.s32.totalorder %s332, %s334
      %p341 = scmp.eq.s32.totalorder %s30, 3
      %p342 = por %p340, %p341
      %p343 = scmp.ne.s32.totalorder %s334, %s335
      %p344 = scmp.eq.s32.totalorder %s30, 0
      %p345 = por %p343, %p344
      %p346 = scmp.ne.s32.totalorder %s334, %s335
      %p347 = scmp.eq.s32.totalorder %s31, 3
      %p348 = por %p346, %p347
      %p350 = scmp.ne.s32.totalorder %s335, %s349
      %p351 = scmp.eq.s32.totalorder %s31, 0
      %p352 = por %p350, %p351
      %s354 = sadd.s32 %s353, 1
      %p357 = scmp.eq.s32.totalorder %s25, 3
      %p358 = scmp.ne.s32.totalorder %s353, %s355
      %p359 = scmp.eq.s32.totalorder %s25, 0
      %p360 = por %p358, %p359
      %p361 = scmp.ne.s32.totalorder %s353, %s355
      %p362 = scmp.eq.s32.totalorder %s30, 3
      %p363 = por %p361, %p362
      %p364 = scmp.ne.s32.totalorder %s355, %s356
      %p365 = scmp.eq.s32.totalorder %s30, 0
      %p366 = por %p364, %p365
      %p367 = scmp.ne.s32.totalorder %s355, %s356
      %p368 = scmp.eq.s32.totalorder %s31, 3
      %p369 = por %p367, %p368
      %p371 = scmp.ne.s32.totalorder %s356, %s370
      %p372 = scmp.eq.s32.totalorder %s31, 0
      %p373 = por %p371, %p372
      %s375 = sadd.s32 %s374, 1
      %p378 = scmp.eq.s32.totalorder %s25, 3
      %p379 = scmp.ne.s32.totalorder %s374, %s376
      %p380 = scmp.eq.s32.totalorder %s25, 0
      %p381 = por %p379, %p380
      %p382 = scmp.ne.s32.totalorder %s374, %s376
      %p383 = scmp.eq.s32.totalorder %s30, 3
      %p384 = por %p382, %p383
      %p385 = scmp.ne.s32.totalorder %s376, %s377
      %p386 = scmp.eq.s32.totalorder %s30, 0
      %p387 = por %p385, %p386
      %p388 = scmp.ne.s32.totalorder %s376, %s377
      %p389 = scmp.eq.s32.totalorder %s31, 3
      %p390 = por %p388, %p389
      %p392 = scmp.ne.s32.totalorder %s377, %s391
      %p393 = scmp.eq.s32.totalorder %s31, 0
      %p394 = por %p392, %p393
      %s396 = sadd.s32 %s395, 1
      %p399 = scmp.eq.s32.totalorder %s25, 3
      %p400 = scmp.ne.s32.totalorder %s395, %s397
      %p401 = scmp.eq.s32.totalorder %s25, 0
      %p402 = por %p400, %p401
      %p403 = scmp.ne.s32.totalorder %s395, %s397
      %p404 = scmp.eq.s32.totalorder %s30, 3
      %p405 = por %p403, %p404
      %p406 = scmp.ne.s32.totalorder %s397, %s398
      %p407 = scmp.eq.s32.totalorder %s30, 0
      %p408 = por %p406, %p407
      %p409 = scmp.ne.s32.totalorder %s397, %s398
      %p410 = scmp.eq.s32.totalorder %s31, 3
      %p411 = por %p409, %p410
      %p413 = scmp.ne.s32.totalorder %s398, %s412
      %p414 = scmp.eq.s32.totalorder %s31, 0
      %p415 = por %p413, %p414
      %s416 = ssub.s32 %s25, %s32
      %p417 = scmp.eq.s32.totalorder %s416, 0
      %s419 = sadd.s32 %s418, 1
      %s420 = scalar_select %p417, %s418, %s419
      %p423 = pneg %p417
      %p424 = scmp.eq.s32.totalorder %s25, 3
      %p425 = por %p423, %p424
      %p426 = scmp.ne.s32.totalorder %s418, %s421
      %p427 = scmp.eq.s32.totalorder %s25, 0
      %p428 = por %p426, %p427
      %p429 = scmp.ne.s32.totalorder %s418, %s421
      %p430 = scmp.eq.s32.totalorder %s30, 3
      %p431 = por %p429, %p430
      %p432 = scmp.ne.s32.totalorder %s421, %s422
      %p433 = scmp.eq.s32.totalorder %s30, 0
      %p434 = por %p432, %p433
      %p435 = scmp.ne.s32.totalorder %s421, %s422
      %p436 = scmp.eq.s32.totalorder %s31, 3
      %p437 = por %p435, %p436
      %p439 = scmp.ne.s32.totalorder %s422, %s438
      %p440 = scmp.eq.s32.totalorder %s31, 0
      %p441 = por %p439, %p440
      %p442 = scmp.le.s32.totalorder 1, %s25
      %p443 = scmp.lt.s32.totalorder %s25, 5
      %p444 = pnand %p442, %p443
      %p445 = pneg %p444
      // Predicated region
      $region9: #{_lambda_.4} parent=5 // pred_check
        _
      $region10: #{_lambda_.4} parent=5 // pred_check_branch
        %447 = sbr.rel (%p444) target = $region12
      $region11: #{_lambda_.4} parent=5 // pred_region
        %s448 = ssub.s32 %s25, 1
        // Predicated region
        $region13: #{_lambda_.4} parent=11 // pred_check
          %p449 = pneg %p46
        $region14: #{_lambda_.4} parent=11 // pred_check_branch
          %451 = sbr.rel (%p449) target = $region16
        $region15: #{_lambda_.4} parent=11 // pred_region
          %453 = vsyncadd [#allocation4], 0
          %s455 = sshll.u32 %s0, 4
          %s456 = int_to_ptr.vmem [resolvable:$true] %s455
          %458 = dma.vmem_to_smem %s456, 16, [#allocation3], [#allocation4]
        $region16: #{_lambda_.4} parent=11 // pred_fallthru
          _
        // Predicated region
        $region17: #{_lambda_.4} parent=11 // pred_check
          %p459 = pneg %p93
        $region18: #{_lambda_.4} parent=11 // pred_check_branch
          %461 = sbr.rel (%p459) target = $region20
        $region19: #{_lambda_.4} parent=11 // pred_region
          _
        $region20: #{_lambda_.4} parent=11 // pred_fallthru
          _
        // Predicated region
        $region21: #{_lambda_.4} parent=11 // pred_check
          %p462 = pneg %p114
        $region22: #{_lambda_.4} parent=11 // pred_check_branch
          %464 = sbr.rel (%p462) target = $region24
        $region23: #{_lambda_.4} parent=11 // pred_region
          _
        $region24: #{_lambda_.4} parent=11 // pred_fallthru
          _
        // Predicated region
        $region25: #{_lambda_.4} parent=11 // pred_check
          %p465 = pneg %p135
        $region26: #{_lambda_.4} parent=11 // pred_check_branch
          %467 = sbr.rel (%p465) target = $region28
        $region27: #{_lambda_.4} parent=11 // pred_region
          _
        $region28: #{_lambda_.4} parent=11 // pred_fallthru
          _
        // Predicated region
        $region29: #{_lambda_.4} parent=11 // pred_check
          %p468 = pneg %p156
        $region30: #{_lambda_.4} parent=11 // pred_check_branch
          %470 = sbr.rel (%p468) target = $region32
        $region31: #{_lambda_.4} parent=11 // pred_region
          _
        $region32: #{_lambda_.4} parent=11 // pred_fallthru
          _
        // Predicated region
        $region33: #{_lambda_.4} parent=11 // pred_check
          %p471 = pneg %p177
        $region34: #{_lambda_.4} parent=11 // pred_check_branch
          %473 = sbr.rel (%p471) target = $region36
        $region35: #{_lambda_.4} parent=11 // pred_region
          _
        $region36: #{_lambda_.4} parent=11 // pred_fallthru
          _
        // Predicated region
        $region37: #{_lambda_.4} parent=11 // pred_check
          %p474 = pneg %p198
        $region38: #{_lambda_.4} parent=11 // pred_check_branch
          %476 = sbr.rel (%p474) target = $region40
        $region39: #{_lambda_.4} parent=11 // pred_region
          _
        $region40: #{_lambda_.4} parent=11 // pred_fallthru
          _
        // Predicated region
        $region41: #{_lambda_.4} parent=11 // pred_check
          %p477 = pneg %p219
        $region42: #{_lambda_.4} parent=11 // pred_check_branch
          %479 = sbr.rel (%p477) target = $region44
        $region43: #{_lambda_.4} parent=11 // pred_region
          _
        $region44: #{_lambda_.4} parent=11 // pred_fallthru
          _
        // Predicated region
        $region45: #{_lambda_.4} parent=11 // pred_check
          %p480 = pneg %p240
        $region46: #{_lambda_.4} parent=11 // pred_check_branch
          %482 = sbr.rel (%p480) target = $region48
        $region47: #{_lambda_.4} parent=11 // pred_region
          _
        $region48: #{_lambda_.4} parent=11 // pred_fallthru
          _
        // Predicated region
        $region49: #{_lambda_.4} parent=11 // pred_check
          %p483 = pneg %p261
        $region50: #{_lambda_.4} parent=11 // pred_check_branch
          %485 = sbr.rel (%p483) target = $region52
        $region51: #{_lambda_.4} parent=11 // pred_region
          _
        $region52: #{_lambda_.4} parent=11 // pred_fallthru
          _
        // Predicated region
        $region53: #{_lambda_.4} parent=11 // pred_check
          %p486 = pneg %p282
        $region54: #{_lambda_.4} parent=11 // pred_check_branch
          %488 = sbr.rel (%p486) target = $region56
        $region55: #{_lambda_.4} parent=11 // pred_region
          _
        $region56: #{_lambda_.4} parent=11 // pred_fallthru
          _
        // Predicated region
        $region57: #{_lambda_.4} parent=11 // pred_check
          %p489 = pneg %p303
        $region58: #{_lambda_.4} parent=11 // pred_check_branch
          %491 = sbr.rel (%p489) target = $region60
        $region59: #{_lambda_.4} parent=11 // pred_region
          _
        $region60: #{_lambda_.4} parent=11 // pred_fallthru
          _
        // Predicated region
        $region61: #{_lambda_.4} parent=11 // pred_check
          %p492 = pneg %p324
        $region62: #{_lambda_.4} parent=11 // pred_check_branch
          %494 = sbr.rel (%p492) target = $region64
        $region63: #{_lambda_.4} parent=11 // pred_region
          _
        $region64: #{_lambda_.4} parent=11 // pred_fallthru
          _
        // Predicated region
        $region65: #{_lambda_.4} parent=11 // pred_check
          %p495 = pneg %p345
        $region66: #{_lambda_.4} parent=11 // pred_check_branch
          %497 = sbr.rel (%p495) target = $region68
        $region67: #{_lambda_.4} parent=11 // pred_region
          _
        $region68: #{_lambda_.4} parent=11 // pred_fallthru
          _
        // Predicated region
        $region69: #{_lambda_.4} parent=11 // pred_check
          %p498 = pneg %p366
        $region70: #{_lambda_.4} parent=11 // pred_check_branch
          %500 = sbr.rel (%p498) target = $region72
        $region71: #{_lambda_.4} parent=11 // pred_region
          _
        $region72: #{_lambda_.4} parent=11 // pred_fallthru
          _
        // Predicated region
        $region73: #{_lambda_.4} parent=11 // pred_check
          %p501 = pneg %p387
        $region74: #{_lambda_.4} parent=11 // pred_check_branch
          %503 = sbr.rel (%p501) target = $region76
        $region75: #{_lambda_.4} parent=11 // pred_region
          _
        $region76: #{_lambda_.4} parent=11 // pred_fallthru
          _
        // Predicated region
        $region77: #{_lambda_.4} parent=11 // pred_check
          %p504 = pneg %p408
        $region78: #{_lambda_.4} parent=11 // pred_check_branch
          %506 = sbr.rel (%p504) target = $region80
        $region79: #{_lambda_.4} parent=11 // pred_region
          _
        $region80: #{_lambda_.4} parent=11 // pred_fallthru
          _
      $region12: #{_lambda_.4} parent=5 // pred_fallthru
        _
      %p507 = scmp.lt.s32.totalorder %s25, 4
      // Predicated region
      $region81: #{_lambda_.4} parent=5 // pred_check
        %p508 = pneg %p507
      $region82: #{_lambda_.4} parent=5 // pred_check_branch
        %510 = sbr.rel (%p508) target = $region84
      $region83: #{_lambda_.4} parent=5 // pred_region
        // Predicated region
        $region85: #{_lambda_.4} parent=83 // pred_check
          %p511 = pneg %p66
        $region86: #{_lambda_.4} parent=83 // pred_check_branch
          %513 = sbr.rel (%p511) target = $region88
        $region87: #{_lambda_.4} parent=83 // pred_region
          %p514 = scmp.lt.s32.totalorder %s25, 3
          %s515 = scalar_select %p514, %s25, 3
          %s516 = smul.addr %s515, 2
          %s517 = smul.addr %s516, 8
          %s518 = scalar_lea.vmem %s1, %s517
        $region88: #{_lambda_.4} parent=83 // pred_fallthru
          _
      $region84: #{_lambda_.4} parent=5 // pred_fallthru
        _
      %p519 = scmp.le.s32.totalorder 1, %s25
      %p520 = scmp.lt.s32.totalorder %s25, 5
      %p521 = pnand %p519, %p520
      %p522 = pneg %p521
      // Predicated region
      $region89: #{_lambda_.4} parent=5 // pred_check
        _
      $region90: #{_lambda_.4} parent=5 // pred_check_branch
        %524 = sbr.rel (%p521) target = $region92
      $region91: #{_lambda_.4} parent=5 // pred_region
        %s525 = ssub.s32 %s25, 1
        // Predicated region
        $region93: #{_lambda_.4} parent=91 // pred_check
          %p526 = pneg %p46
        $region94: #{_lambda_.4} parent=91 // pred_check_branch
          %528 = sbr.rel (%p526) target = $region96
        $region95: #{_lambda_.4} parent=91 // pred_region
          %530 = dma.done [#allocation4], 16
        $region96: #{_lambda_.4} parent=91 // pred_fallthru
          _
        %531 = sfence
        %p532 = pneg %p46
        %p533 = pneg %p43
        %p534 = scmp.lt.s32.totalorder %s30, 3
        %s535 = scalar_select %p534, %s30, 3
        %s536 = smul.addr %s535, 2
        %s537 = smul.addr %s536, 8
        %s538 = scalar_lea.vmem %s1, %s537
        %p539 = pneg %p72
        %p540 = pneg %p69
        %p541 = pneg %p93
        %p542 = pneg %p90
        %p543 = pneg %p114
        %p544 = pneg %p111
        %p545 = pneg %p135
        %p546 = pneg %p132
        %p547 = pneg %p156
        %p548 = pneg %p153
        %p549 = pneg %p177
        %p550 = pneg %p174
        %p551 = pneg %p198
        %p552 = pneg %p195
        %p553 = pneg %p219
        %p554 = pneg %p216
        %p555 = pneg %p240
        %p556 = pneg %p237
        %p557 = pneg %p261
        %p558 = pneg %p258
        %p559 = pneg %p282
        %p560 = pneg %p279
        %p561 = pneg %p303
        %p562 = pneg %p300
        %p563 = pneg %p324
        %p564 = pneg %p321
        %p565 = pneg %p345
        %p566 = pneg %p342
        %p567 = pneg %p366
        %p568 = pneg %p363
        %p569 = pneg %p387
        %p570 = pneg %p384
        %p571 = pneg %p408
        %p572 = pneg %p405
        %p573 = pneg %p434
        %p574 = pneg %p431
        %p575 = scmp.lt.s32.totalorder %s30, 3
        %s576 = scalar_select %p575, %s30, 3
        %s577 = scalar_lea.vmem %s18, %s576
        %p578 = scmp.lt.s32.totalorder %s30, 3
        %s579 = scalar_select %p578, %s30, 3
        %s580 = smul.addr %s579, 2
        %s581 = smul.addr %s580, 8
        %s582 = scalar_lea.vmem %s1, %s581
        %p583 = scmp.lt.s32.totalorder %s30, 3
        %s584 = scalar_select %p583, %s30, 3
        %s585 = scalar_lea.vmem %s18, %s584
        %v587 = vld [vmem:[%s582] sm:$0xff]
        %v588 = vld [vmem:[%s582 + $0x8] sm:$0xff]
        %v589 = vld [vmem:[%s2] sm:$0xff]
        %v590 = vld [vmem:[%s2 + $0x8] sm:$0xff]
        %v591 = vadd.f32 %v587, %v589
        %v592 = vadd.f32 %v588, %v590
        %v593 = vld [vmem:[%s3] sm:$0x1]
        %v594 = vld [vmem:[%s4] sm:$0x1]
        %vm595 = vcmask 261120
        %v596 = vsel %vm595, %v591, 0.0
        %597 = vadd.xlane.f32.xlu0 %v596
        %v598 = vpop.xlane.xlu0 %597
        %v599 = vsel %vm595, %v592, 0.0
        %600 = vadd.xlane.f32.xlu0 %v599
        %v601 = vpop.xlane.xlu0 %600
        %v602 = vrcp.pop 32.0
        %v603 = vmul.f32 32.0, %v602
        %v604 = vsub.f32 1.0, %v603
        %v605 = vmul.f32 %v602, %v604
        %v606 = vadd.f32 %v602, %v605
        %vm607 = vweird.f32 %v602
        %v608 = vsel %vm607, %v602, %v606
        %v609 = vmul.f32 %v598, %v608
        %v610 = vmul.f32 %v601, %v608
        %v611 = vsub.f32 %v591, %v609
        %v612 = vsub.f32 %v592, %v610
        %v613 = vmul.f32 %v611, %v611
        %v614 = vmul.f32 %v612, %v612
        %v615 = vsel %vm595, %v613, 0.0
        %616 = vadd.xlane.f32.xlu0 %v615
        %v617 = vpop.xlane.xlu0 %616
        %v618 = vsel %vm595, %v614, 0.0
        %619 = vadd.xlane.f32.xlu0 %v618
        %v620 = vpop.xlane.xlu0 %619
        %v621 = vmul.f32 %v617, %v608
        %v622 = vmul.f32 %v620, %v608
        %v623 = vadd.f32 %v621, 1e-05
        %v624 = vadd.f32 %v622, 1e-05
        %v625 = vrsqrt.pop %v623
        %v626 = vmul.f32 %v625, %v623
        %v627 = vmul.f32 %v626, %v625
        %v628 = vmul.f32 0.5, %v627
        %v629 = vsub.f32 1.5, %v628
        %v630 = vmul.f32 %v625, %v629
        %vm631 = vweird.f32 %v623
        %vm632 = vweird.f32 %v625
        %vm633 = vmor %vm631, %vm632
        %v634 = vsel %vm633, %v625, %v630
        %v635 = vrsqrt.pop %v624
        %v636 = vmul.f32 %v635, %v624
        %v637 = vmul.f32 %v636, %v635
        %v638 = vmul.f32 0.5, %v637
        %v639 = vsub.f32 1.5, %v638
        %v640 = vmul.f32 %v635, %v639
        %vm641 = vweird.f32 %v624
        %vm642 = vweird.f32 %v635
        %vm643 = vmor %vm641, %vm642
        %v644 = vsel %vm643, %v635, %v640
        %v645 = vmul.f32 %v611, %v634
        %v646 = vmul.f32 %v612, %v644
        %v648 = vperm.slane %v593, 0
        %v650 = vmul.f32 %v645, %v648
        %v651 = vmul.f32 %v646, %v648
        %v653 = vperm.slane %v594, 0
        %v655 = vadd.f32 %v650, %v653
        %v656 = vadd.f32 %v651, %v653
        %v657 = vld [vmem:[%s5] sm:$0xf]
        %v658 = vld [vmem:[%s5 + $0x4] sm:$0xf]
        %v659 = vld [vmem:[%s5 + $0x8] sm:$0xf]
        %v660 = vld [vmem:[%s5 + $0xc] sm:$0xf]
        %v661 = vld [vmem:[%s6] sm:$0x1]
        %v662 = vpack.c.bf16 %v656, %v655
        %v664 = vperm.slane %v661, 0
        %v670 = vunpack.c.l.b16 %v657
        %v671 = vunpack.c.l.b16 %v658
        %v672 = vunpack.c.l.b16 %v659
        %v673 = vunpack.c.l.b16 %v660
        %v674 = vpack.c.b16 %v671, %v670
        %v675 = vpack.c.b16 %v673, %v672
        %v679 = vsel %vm595, %v662, 0
        %681 = vmatpush.bf16.msra.mxu0 0
        %682 = vmatpush.bf16.msra.mxu0 0
        %683 = vmatpush.bf16.msra.mxu0 0
        %684 = vmatpush.bf16.msra.mxu0 0
        %685 = vmatpush.bf16.msra.mxu0 0
        %686 = vmatpush.bf16.msra.mxu0 0
        %687 = vmatpush.bf16.msra.mxu0 %v675
        %688 = vmatpush.bf16.msra.mxu0 %v674
        %689 = vmatmul.bf16.gmra.mxu0 %v679
        %v690 = vpop.f32.mrf.mxu0
        %v691 = vadd.f32 %v664, %v690
        %v692 = vpop.f32.mrf.mxu0
        %v693 = vadd.f32 %v664, %v692
        %694 = vdwg.mxu0
        %v695 = vlaneseq
        %v696 = vshrl.u32 %v695, 7
        %v697 = vadd.s32 %v696, 8
        %v698 = vlaneseq
        %v699 = vand.u32 %v698, 127
        %vm700 = vcmp.ge.s32.totalorder %v696, %v699
        %vm701 = vcmp.ge.s32.totalorder %v697, %v699
        %v702 = vsel %vm700, 0.0, -1e+09
        %v703 = vsel %vm701, 0.0, -1e+09
        %v704 = vpack.c.bf16 %v693, %v691
        %706 = vrot.lane.b32.xlu0 %v704, 96
        %v707 = vpop.permute.xlu0 %706
        %vm708 = vcmask 64512
        %v710 = vsel %vm708, %v704, 0
        %v713 = vsel %vm708, %v707, 0
        %715 = vmatpush.bf16.xpose.msra.mxu0 0
        %716 = vmatpush.bf16.xpose.msra.mxu0 0
        %717 = vmatpush.bf16.xpose.msra.mxu0 0
        %718 = vmatpush.bf16.xpose.msra.mxu0 0
        %719 = vmatpush.bf16.xpose.msra.mxu0 0
        %720 = vmatpush.bf16.xpose.msra.mxu0 0
        %721 = vmatpush.bf16.xpose.msra.mxu0 0
        %722 = vmatpush.bf16.xpose.msra.mxu0 %v713
        %723 = vmatmul.bf16.gmra.mxu0 %v710
        %v724 = vpop.f32.mrf.mxu0
        %v725 = vadd.f32 0.0, %v724
        %v726 = vpop.f32.mrf.mxu0
        %v727 = vadd.f32 0.0, %v726
        %728 = vdwg.mxu0
        %v729 = vmul.f32 %v725, 0.35355338
        %v730 = vmul.f32 %v727, 0.35355338
        %v731 = vadd.f32 %v729, %v702
        %v732 = vadd.f32 %v730, %v703
        %vm733 = vcmask 130048
        %v734 = vsel %vm733, %v731, -inf
        %735 = vmax.xlane.f32.xlu0 %v734
        %v736 = vpop.xlane.xlu0 %735
        %v737 = vsel %vm733, %v732, -inf
        %738 = vmax.xlane.f32.xlu0 %v737
        %v739 = vpop.xlane.xlu0 %738
        %v740 = vsub.f32 %v731, %v736
        %v741 = vsub.f32 %v732, %v739
        %v742 = vmul.f32 %v740, 1.442695
        %v743 = vpow.pop %v742
        %v744 = vmul.f32 %v741, 1.442695
        %v745 = vpow.pop %v744
        %v746 = vsel %vm733, %v743, 0.0
        %747 = vadd.xlane.f32.xlu0 %v746
        %v748 = vpop.xlane.xlu0 %747
        %v749 = vsel %vm733, %v745, 0.0
        %750 = vadd.xlane.f32.xlu0 %v749
        %v751 = vpop.xlane.xlu0 %750
        %v752 = vrcp.pop %v748
        %v753 = vrcp.pop %v751
        %v754 = vmul.f32 %v743, %v752
        %v755 = vmul.f32 %v745, %v753
        %v756 = vpack.c.bf16 %v755, %v754
        %757 = vrot.lane.b32.xlu0 %v704, 64
        %v758 = vpop.permute.xlu0 %757
        %v761 = vsel %vm733, %v756, 0
        %763 = vmatpush.bf16.msra.mxu0 0
        %764 = vmatpush.bf16.msra.mxu0 0
        %765 = vmatpush.bf16.msra.mxu0 0
        %766 = vmatpush.bf16.msra.mxu0 0
        %767 = vmatpush.bf16.msra.mxu0 0
        %768 = vmatpush.bf16.msra.mxu0 0
        %769 = vmatpush.bf16.msra.mxu0 0
        %770 = vmatpush.bf16.msra.mxu0 %v758
        %771 = vmatmul.bf16.gmra.mxu0 %v761
        %v772 = vpop.f32.mrf.mxu0
        %v773 = vadd.f32 0.0, %v772
        %v774 = vpop.f32.mrf.mxu0
        %v775 = vadd.f32 0.0, %v774
        %776 = vdwg.mxu0
        %777 = vst.msk [vmem:[#allocation2] sm:$0xff] %vm708, %v773
        %778 = vst.msk [vmem:[#allocation2 + $0x8] sm:$0xff] %vm708, %v775
        %779 = vrot.lane.b32.xlu0 %v704, 120
        %v780 = vpop.permute.xlu0 %779
        %781 = vrot.lane.b32.xlu0 %v704, 88
        %v782 = vpop.permute.xlu0 %781
        %v784 = vsel %vm708, %v780, 0
        %v787 = vsel %vm708, %v782, 0
        %789 = vmatpush.bf16.xpose.msra.mxu0 0
        %790 = vmatpush.bf16.xpose.msra.mxu0 0
        %791 = vmatpush.bf16.xpose.msra.mxu0 0
        %792 = vmatpush.bf16.xpose.msra.mxu0 0
        %793 = vmatpush.bf16.xpose.msra.mxu0 0
        %794 = vmatpush.bf16.xpose.msra.mxu0 0
        %795 = vmatpush.bf16.xpose.msra.mxu0 0
        %796 = vmatpush.bf16.xpose.msra.mxu0 %v787
        %797 = vmatmul.bf16.gmra.mxu0 %v784
        %v798 = vpop.f32.mrf.mxu0
        %v799 = vadd.f32 0.0, %v798
        %v800 = vpop.f32.mrf.mxu0
        %v801 = vadd.f32 0.0, %v800
        %802 = vdwg.mxu0
        %v803 = vmul.f32 %v799, 0.35355338
        %v804 = vmul.f32 %v801, 0.35355338
        %v805 = vadd.f32 %v803, %v702
        %v806 = vadd.f32 %v804, %v703
        %v807 = vsel %vm733, %v805, -inf
        %808 = vmax.xlane.f32.xlu0 %v807
        %v809 = vpop.xlane.xlu0 %808
        %v810 = vsel %vm733, %v806, -inf
        %811 = vmax.xlane.f32.xlu0 %v810
        %v812 = vpop.xlane.xlu0 %811
        %v813 = vsub.f32 %v805, %v809
        %v814 = vsub.f32 %v806, %v812
        %v815 = vmul.f32 %v813, 1.442695
        %v816 = vpow.pop %v815
        %v817 = vmul.f32 %v814, 1.442695
        %v818 = vpow.pop %v817
        %v819 = vsel %vm733, %v816, 0.0
        %820 = vadd.xlane.f32.xlu0 %v819
        %v821 = vpop.xlane.xlu0 %820
        %v822 = vsel %vm733, %v818, 0.0
        %823 = vadd.xlane.f32.xlu0 %v822
        %v824 = vpop.xlane.xlu0 %823
        %v825 = vrcp.pop %v821
        %v826 = vrcp.pop %v824
        %v827 = vmul.f32 %v816, %v825
        %v828 = vmul.f32 %v818, %v826
        %v829 = vpack.c.bf16 %v828, %v827
        %830 = vrot.lane.b32.xlu0 %v704, 56
        %v831 = vpop.permute.xlu0 %830
        %v834 = vsel %vm733, %v829, 0
        %836 = vmatpush.bf16.msra.mxu0 0
        %837 = vmatpush.bf16.msra.mxu0 0
        %838 = vmatpush.bf16.msra.mxu0 0
        %839 = vmatpush.bf16.msra.mxu0 0
        %840 = vmatpush.bf16.msra.mxu0 0
        %841 = vmatpush.bf16.msra.mxu0 0
        %842 = vmatpush.bf16.msra.mxu0 0
        %843 = vmatpush.bf16.msra.mxu0 %v831
        %844 = vmatmul.bf16.gmra.mxu0 %v834
        %v845 = vpop.f32.mrf.mxu0
        %v846 = vadd.f32 0.0, %v845
        %v847 = vpop.f32.mrf.mxu0
        %v848 = vadd.f32 0.0, %v847
        %849 = vdwg.mxu0
        %852 = vrot.lane.b32.xlu0 %v846, 8
        %v853 = vpop.permute.xlu0 %852
        %854 = vrot.lane.b32.xlu0 %v848, 8
        %v855 = vpop.permute.xlu0 %854
        %vm858 = vcmask 130112
        %859 = vst.msk [vmem:[#allocation2] sm:$0xff] %vm858, %v853
        %860 = vst.msk [vmem:[#allocation2 + $0x8] sm:$0xff] %vm858, %v855
        %861 = vrot.lane.b32.xlu0 %v704, 112
        %v862 = vpop.permute.xlu0 %861
        %863 = vrot.lane.b32.xlu0 %v704, 80
        %v864 = vpop.permute.xlu0 %863
        %v866 = vsel %vm708, %v862, 0
        %v869 = vsel %vm708, %v864, 0
        %871 = vmatpush.bf16.xpose.msra.mxu0 0
        %872 = vmatpush.bf16.xpose.msra.mxu0 0
        %873 = vmatpush.bf16.xpose.msra.mxu0 0
        %874 = vmatpush.bf16.xpose.msra.mxu0 0
        %875 = vmatpush.bf16.xpose.msra.mxu0 0
        %876 = vmatpush.bf16.xpose.msra.mxu0 0
        %877 = vmatpush.bf16.xpose.msra.mxu0 0
        %878 = vmatpush.bf16.xpose.msra.mxu0 %v869
        %879 = vmatmul.bf16.gmra.mxu0 %v866
        %v880 = vpop.f32.mrf.mxu0
        %v881 = vadd.f32 0.0, %v880
        %v882 = vpop.f32.mrf.mxu0
        %v883 = vadd.f32 0.0, %v882
        %884 = vdwg.mxu0
        %v885 = vmul.f32 %v881, 0.35355338
        %v886 = vmul.f32 %v883, 0.35355338
        %v887 = vadd.f32 %v885, %v702
        %v888 = vadd.f32 %v886, %v703
        %v889 = vsel %vm733, %v887, -inf
        %890 = vmax.xlane.f32.xlu0 %v889
        %v891 = vpop.xlane.xlu0 %890
        %v892 = vsel %vm733, %v888, -inf
        %893 = vmax.xlane.f32.xlu0 %v892
        %v894 = vpop.xlane.xlu0 %893
        %v895 = vsub.f32 %v887, %v891
        %v896 = vsub.f32 %v888, %v894
        %v897 = vmul.f32 %v895, 1.442695
        %v898 = vpow.pop %v897
        %v899 = vmul.f32 %v896, 1.442695
        %v900 = vpow.pop %v899
        %v901 = vsel %vm733, %v898, 0.0
        %902 = vadd.xlane.f32.xlu0 %v901
        %v903 = vpop.xlane.xlu0 %902
        %v904 = vsel %vm733, %v900, 0.0
        %905 = vadd.xlane.f32.xlu0 %v904
        %v906 = vpop.xlane.xlu0 %905
        %v907 = vrcp.pop %v903
        %v908 = vrcp.pop %v906
        %v909 = vmul.f32 %v898, %v907
        %v910 = vmul.f32 %v900, %v908
        %v911 = vpack.c.bf16 %v910, %v909
        %912 = vrot.lane.b32.xlu0 %v704, 48
        %v913 = vpop.permute.xlu0 %912
        %v916 = vsel %vm733, %v911, 0
        %918 = vmatpush.bf16.msra.mxu0 0
        %919 = vmatpush.bf16.msra.mxu0 0
        %920 = vmatpush.bf16.msra.mxu0 0
        %921 = vmatpush.bf16.msra.mxu0 0
        %922 = vmatpush.bf16.msra.mxu0 0
        %923 = vmatpush.bf16.msra.mxu0 0
        %924 = vmatpush.bf16.msra.mxu0 0
        %925 = vmatpush.bf16.msra.mxu0 %v913
        %926 = vmatmul.bf16.gmra.mxu0 %v916
        %v927 = vpop.f32.mrf.mxu0
        %v928 = vadd.f32 0.0, %v927
        %v929 = vpop.f32.mrf.mxu0
        %v930 = vadd.f32 0.0, %v929
        %931 = vdwg.mxu0
        %934 = vrot.lane.b32.xlu0 %v928, 16
        %v935 = vpop.permute.xlu0 %934
        %936 = vrot.lane.b32.xlu0 %v930, 16
        %v937 = vpop.permute.xlu0 %936
        %vm940 = vcmask 195712
        %941 = vst.msk [vmem:[#allocation2] sm:$0xff] %vm940, %v935
        %942 = vst.msk [vmem:[#allocation2 + $0x8] sm:$0xff] %vm940, %v937
        %943 = vrot.lane.b32.xlu0 %v704, 104
        %v944 = vpop.permute.xlu0 %943
        %945 = vrot.lane.b32.xlu0 %v704, 72
        %v946 = vpop.permute.xlu0 %945
        %v948 = vsel %vm708, %v944, 0
        %v951 = vsel %vm708, %v946, 0
        %953 = vmatpush.bf16.xpose.msra.mxu0 0
        %954 = vmatpush.bf16.xpose.msra.mxu0 0
        %955 = vmatpush.bf16.xpose.msra.mxu0 0
        %956 = vmatpush.bf16.xpose.msra.mxu0 0
        %957 = vmatpush.bf16.xpose.msra.mxu0 0
        %958 = vmatpush.bf16.xpose.msra.mxu0 0
        %959 = vmatpush.bf16.xpose.msra.mxu0 0
        %960 = vmatpush.bf16.xpose.msra.mxu0 %v951
        %961 = vmatmul.bf16.gmra.mxu0 %v948
        %v962 = vpop.f32.mrf.mxu0
        %v963 = vadd.f32 0.0, %v962
        %v964 = vpop.f32.mrf.mxu0
        %v965 = vadd.f32 0.0, %v964
        %966 = vdwg.mxu0
        %v967 = vmul.f32 %v963, 0.35355338
        %v968 = vmul.f32 %v965, 0.35355338
        %v969 = vadd.f32 %v967, %v702
        %v970 = vadd.f32 %v968, %v703
        %v971 = vsel %vm733, %v969, -inf
        %972 = vmax.xlane.f32.xlu0 %v971
        %v973 = vpop.xlane.xlu0 %972
        %v974 = vsel %vm733, %v970, -inf
        %975 = vmax.xlane.f32.xlu0 %v974
        %v976 = vpop.xlane.xlu0 %975
        %v977 = vsub.f32 %v969, %v973
        %v978 = vsub.f32 %v970, %v976
        %v979 = vmul.f32 %v977, 1.442695
        %v980 = vpow.pop %v979
        %v981 = vmul.f32 %v978, 1.442695
        %v982 = vpow.pop %v981
        %v983 = vsel %vm733, %v980, 0.0
        %984 = vadd.xlane.f32.xlu0 %v983
        %v985 = vpop.xlane.xlu0 %984
        %v986 = vsel %vm733, %v982, 0.0
        %987 = vadd.xlane.f32.xlu0 %v986
        %v988 = vpop.xlane.xlu0 %987
        %v989 = vrcp.pop %v985
        %v990 = vrcp.pop %v988
        %v991 = vmul.f32 %v980, %v989
        %v992 = vmul.f32 %v982, %v990
        %v993 = vpack.c.bf16 %v992, %v991
        %994 = vrot.lane.b32.xlu0 %v704, 40
        %v995 = vpop.permute.xlu0 %994
        %v998 = vsel %vm733, %v993, 0
        %1000 = vmatpush.bf16.msra.mxu0 0
        %1001 = vmatpush.bf16.msra.mxu0 0
        %1002 = vmatpush.bf16.msra.mxu0 0
        %1003 = vmatpush.bf16.msra.mxu0 0
        %1004 = vmatpush.bf16.msra.mxu0 0
        %1005 = vmatpush.bf16.msra.mxu0 0
        %1006 = vmatpush.bf16.msra.mxu0 0
        %1007 = vmatpush.bf16.msra.mxu0 %v995
        %1008 = vmatmul.bf16.gmra.mxu0 %v998
        %v1009 = vpop.f32.mrf.mxu0
        %v1010 = vadd.f32 0.0, %v1009
        %v1011 = vpop.f32.mrf.mxu0
        %v1012 = vadd.f32 0.0, %v1011
        %1013 = vdwg.mxu0
        %1016 = vrot.lane.b32.xlu0 %v1010, 24
        %v1017 = vpop.permute.xlu0 %1016
        %1018 = vrot.lane.b32.xlu0 %v1012, 24
        %v1019 = vpop.permute.xlu0 %1018
        %vm1022 = vcmask 261312
        %1023 = vst.msk [vmem:[#allocation2] sm:$0xff] %vm1022, %v1017
        %1024 = vst.msk [vmem:[#allocation2 + $0x8] sm:$0xff] %vm1022, %v1019
        %v1025 = vld [vmem:[#allocation2] sm:$0xff]
        %v1026 = vld [vmem:[#allocation2 + $0x8] sm:$0xff]
        %v1027 = vld [vmem:[%s7] sm:$0xf]
        %v1028 = vld [vmem:[%s7 + $0x4] sm:$0xf]
        %v1029 = vld [vmem:[%s7 + $0x8] sm:$0xf]
        %v1030 = vld [vmem:[%s7 + $0xc] sm:$0xf]
        %v1031 = vld [vmem:[%s8] sm:$0x1]
        %v1032 = vpack.c.bf16 %v1026, %v1025
        %v1034 = vperm.slane %v1031, 0
        %v1040 = vunpack.c.l.b16 %v1027
        %v1041 = vunpack.c.l.b16 %v1028
        %v1042 = vunpack.c.l.b16 %v1029
        %v1043 = vunpack.c.l.b16 %v1030
        %v1044 = vpack.c.b16 %v1041, %v1040
        %v1045 = vpack.c.b16 %v1043, %v1042
        %v1049 = vsel %vm595, %v1032, 0
        %1051 = vmatpush.bf16.msra.mxu0 0
        %1052 = vmatpush.bf16.msra.mxu0 0
        %1053 = vmatpush.bf16.msra.mxu0 0
        %1054 = vmatpush.bf16.msra.mxu0 0
        %1055 = vmatpush.bf16.msra.mxu0 0
        %1056 = vmatpush.bf16.msra.mxu0 0
        %1057 = vmatpush.bf16.msra.mxu0 %v1045
        %1058 = vmatpush.bf16.msra.mxu0 %v1044
        %1059 = vmatmul.bf16.gmra.mxu0 %v1049
        %v1060 = vpop.f32.mrf.mxu0
        %v1061 = vadd.f32 %v1034, %v1060
        %v1062 = vpop.f32.mrf.mxu0
        %v1063 = vadd.f32 %v1034, %v1062
        %1064 = vdwg.mxu0
        %v1065 = vadd.f32 %v591, %v1061
        %v1066 = vadd.f32 %v592, %v1063
        %v1067 = vld [vmem:[%s9] sm:$0x1]
        %v1068 = vld [vmem:[%s10] sm:$0x1]
        %v1069 = vsel %vm595, %v1065, 0.0
        %1070 = vadd.xlane.f32.xlu0 %v1069
        %v1071 = vpop.xlane.xlu0 %1070
        %v1072 = vsel %vm595, %v1066, 0.0
        %1073 = vadd.xlane.f32.xlu0 %v1072
        %v1074 = vpop.xlane.xlu0 %1073
        %v1075 = vmul.f32 %v1071, %v608
        %v1076 = vmul.f32 %v1074, %v608
        %v1077 = vsub.f32 %v1065, %v1075
        %v1078 = vsub.f32 %v1066, %v1076
        %v1079 = vmul.f32 %v1077, %v1077
        %v1080 = vmul.f32 %v1078, %v1078
        %v1081 = vsel %vm595, %v1079, 0.0
        %1082 = vadd.xlane.f32.xlu0 %v1081
        %v1083 = vpop.xlane.xlu0 %1082
        %v1084 = vsel %vm595, %v1080, 0.0
        %1085 = vadd.xlane.f32.xlu0 %v1084
        %v1086 = vpop.xlane.xlu0 %1085
        %v1087 = vmul.f32 %v1083, %v608
        %v1088 = vmul.f32 %v1086, %v608
        %v1089 = vadd.f32 %v1087, 1e-05
        %v1090 = vadd.f32 %v1088, 1e-05
        %v1091 = vrsqrt.pop %v1089
        %v1092 = vmul.f32 %v1091, %v1089
        %v1093 = vmul.f32 %v1092, %v1091
        %v1094 = vmul.f32 0.5, %v1093
        %v1095 = vsub.f32 1.5, %v1094
        %v1096 = vmul.f32 %v1091, %v1095
        %vm1097 = vweird.f32 %v1089
        %vm1098 = vweird.f32 %v1091
        %vm1099 = vmor %vm1097, %vm1098
        %v1100 = vsel %vm1099, %v1091, %v1096
        %v1101 = vrsqrt.pop %v1090
        %v1102 = vmul.f32 %v1101, %v1090
        %v1103 = vmul.f32 %v1102, %v1101
        %v1104 = vmul.f32 0.5, %v1103
        %v1105 = vsub.f32 1.5, %v1104
        %v1106 = vmul.f32 %v1101, %v1105
        %vm1107 = vweird.f32 %v1090
        %vm1108 = vweird.f32 %v1101
        %vm1109 = vmor %vm1107, %vm1108
        %v1110 = vsel %vm1109, %v1101, %v1106
        %v1111 = vmul.f32 %v1077, %v1100
        %v1112 = vmul.f32 %v1078, %v1110
        %v1114 = vperm.slane %v1067, 0
        %v1116 = vmul.f32 %v1111, %v1114
        %v1117 = vmul.f32 %v1112, %v1114
        %v1119 = vperm.slane %v1068, 0
        %v1121 = vadd.f32 %v1116, %v1119
        %v1122 = vadd.f32 %v1117, %v1119
        %v1123 = vld [vmem:[%s11] sm:$0xf]
        %v1124 = vld [vmem:[%s11 + $0x4] sm:$0xf]
        %v1125 = vld [vmem:[%s11 + $0x8] sm:$0xf]
        %v1126 = vld [vmem:[%s11 + $0xc] sm:$0xf]
        %v1127 = vld [vmem:[%s12] sm:$0x1]
        %v1128 = vpack.c.bf16 %v1122, %v1121
        %v1130 = vperm.slane %v1127, 0
        %v1136 = vunpack.c.l.b16 %v1123
        %v1137 = vunpack.c.l.b16 %v1124
        %v1138 = vunpack.c.l.b16 %v1125
        %v1139 = vunpack.c.l.b16 %v1126
        %v1140 = vpack.c.b16 %v1137, %v1136
        %v1141 = vpack.c.b16 %v1139, %v1138
        %v1145 = vsel %vm595, %v1128, 0
        %1147 = vmatpush.bf16.msra.mxu0 0
        %1148 = vmatpush.bf16.msra.mxu0 0
        %1149 = vmatpush.bf16.msra.mxu0 0
        %1150 = vmatpush.bf16.msra.mxu0 0
        %1151 = vmatpush.bf16.msra.mxu0 0
        %1152 = vmatpush.bf16.msra.mxu0 0
        %1153 = vmatpush.bf16.msra.mxu0 %v1141
        %1154 = vmatpush.bf16.msra.mxu0 %v1140
        %1155 = vmatmul.bf16.gmra.mxu0 %v1145
        %v1156 = vpop.f32.mrf.mxu0
        %v1157 = vadd.f32 %v1130, %v1156
        %v1158 = vpop.f32.mrf.mxu0
        %v1159 = vadd.f32 %v1130, %v1158
        %1160 = vdwg.mxu0
        %v1161 = vmul.f32 %v1157, 1.702
        %v1162 = vmul.f32 %v1159, 1.702
        %v1163 = vxor.u32 %v1161, 2147483648
        %v1164 = vxor.u32 %v1162, 2147483648
        %v1165 = vmul.f32 %v1163, 1.442695
        %v1166 = vpow.pop %v1165
        %v1167 = vmul.f32 %v1164, 1.442695
        %v1168 = vpow.pop %v1167
        %v1169 = vadd.f32 %v1166, 1.0
        %v1170 = vadd.f32 %v1168, 1.0
        %v1171 = vrcp.pop %v1169
        %v1172 = vmul.f32 %v1169, %v1171
        %v1173 = vsub.f32 1.0, %v1172
        %v1174 = vmul.f32 %v1171, %v1173
        %v1175 = vadd.f32 %v1171, %v1174
        %vm1176 = vweird.f32 %v1169
        %vm1177 = vweird.f32 %v1171
        %vm1178 = vmor %vm1176, %vm1177
        %v1179 = vsel %vm1178, %v1171, %v1175
        %v1180 = vand.u32 2147483647, %v1169
        %vm1181 = vcmp.eq.f32.partialorder %v1180, 8.507059e+37
        %v1182 = vand.u32 %v1169, 2147483648
        %v1183 = vor.u32 1.1754944e-38, %v1182
        %v1184 = vsel %vm1181, %v1183, %v1179
        %v1185 = vmul.f32 1.0, %v1184
        %v1186 = vrcp.pop %v1170
        %v1187 = vmul.f32 %v1170, %v1186
        %v1188 = vsub.f32 1.0, %v1187
        %v1189 = vmul.f32 %v1186, %v1188
        %v1190 = vadd.f32 %v1186, %v1189
        %vm1191 = vweird.f32 %v1170
        %vm1192 = vweird.f32 %v1186
        %vm1193 = vmor %vm1191, %vm1192
        %v1194 = vsel %vm1193, %v1186, %v1190
        %v1195 = vand.u32 2147483647, %v1170
        %vm1196 = vcmp.eq.f32.partialorder %v1195, 8.507059e+37
        %v1197 = vand.u32 %v1170, 2147483648
        %v1198 = vor.u32 1.1754944e-38, %v1197
        %v1199 = vsel %vm1196, %v1198, %v1194
        %v1200 = vmul.f32 1.0, %v1199
        %v1201 = vmul.f32 %v1157, %v1185
        %v1202 = vmul.f32 %v1159, %v1200
        %v1203 = vld [vmem:[%s13] sm:$0xf]
        %v1204 = vld [vmem:[%s13 + $0x4] sm:$0xf]
        %v1205 = vld [vmem:[%s13 + $0x8] sm:$0xf]
        %v1206 = vld [vmem:[%s13 + $0xc] sm:$0xf]
        %v1207 = vld [vmem:[%s13 + $0x10] sm:$0xf]
        %v1208 = vld [vmem:[%s13 + $0x14] sm:$0xf]
        %v1209 = vld [vmem:[%s13 + $0x18] sm:$0xf]
        %v1210 = vld [vmem:[%s13 + $0x1c] sm:$0xf]
        %v1211 = vld [vmem:[%s13 + $0x20] sm:$0xf]
        %v1212 = vld [vmem:[%s13 + $0x24] sm:$0xf]
        %v1213 = vld [vmem:[%s13 + $0x28] sm:$0xf]
        %v1214 = vld [vmem:[%s13 + $0x2c] sm:$0xf]
        %v1215 = vld [vmem:[%s13 + $0x30] sm:$0xf]
        %v1216 = vld [vmem:[%s13 + $0x34] sm:$0xf]
        %v1217 = vld [vmem:[%s13 + $0x38] sm:$0xf]
        %v1218 = vld [vmem:[%s13 + $0x3c] sm:$0xf]
        %v1219 = vld [vmem:[%s14] sm:$0x1]
        %v1220 = vpack.c.bf16 %v1202, %v1201
        %v1222 = vperm.slane %v1219, 0
        %v1240 = vunpack.c.l.b16 %v1203
        %v1241 = vunpack.c.l.b16 %v1204
        %v1242 = vunpack.c.l.b16 %v1205
        %v1243 = vunpack.c.l.b16 %v1206
        %v1244 = vunpack.c.l.b16 %v1207
        %v1245 = vunpack.c.l.b16 %v1208
        %v1246 = vunpack.c.l.b16 %v1209
        %v1247 = vunpack.c.l.b16 %v1210
        %v1248 = vunpack.c.l.b16 %v1211
        %v1249 = vunpack.c.l.b16 %v1212
        %v1250 = vunpack.c.l.b16 %v1213
        %v1251 = vunpack.c.l.b16 %v1214
        %v1252 = vunpack.c.l.b16 %v1215
        %v1253 = vunpack.c.l.b16 %v1216
        %v1254 = vunpack.c.l.b16 %v1217
        %v1255 = vunpack.c.l.b16 %v1218
        %v1256 = vpack.c.b16 %v1241, %v1240
        %v1257 = vpack.c.b16 %v1243, %v1242
        %v1258 = vpack.c.b16 %v1245, %v1244
        %v1259 = vpack.c.b16 %v1247, %v1246
        %v1260 = vpack.c.b16 %v1249, %v1248
        %v1261 = vpack.c.b16 %v1251, %v1250
        %v1262 = vpack.c.b16 %v1253, %v1252
        %v1263 = vpack.c.b16 %v1255, %v1254
        %1272 = vmatpush.bf16.msra.mxu0 %v1263
        %1273 = vmatpush.bf16.msra.mxu0 %v1262
        %1274 = vmatpush.bf16.msra.mxu0 %v1261
        %1275 = vmatpush.bf16.msra.mxu0 %v1260
        %1276 = vmatpush.bf16.msra.mxu0 %v1259
        %1277 = vmatpush.bf16.msra.mxu0 %v1258
        %1278 = vmatpush.bf16.msra.mxu0 %v1257
        %1279 = vmatpush.bf16.msra.mxu0 %v1256
        %1280 = vmatmul.bf16.gmra.mxu0 %v1220
        %v1281 = vpop.f32.mrf.mxu0
        %v1282 = vadd.f32 %v1222, %v1281
        %v1283 = vpop.f32.mrf.mxu0
        %v1284 = vadd.f32 %v1222, %v1283
        %1285 = vdwg.mxu0
        %v1286 = vadd.f32 %v1065, %v1282
        %v1287 = vadd.f32 %v1066, %v1284
        %v1288 = vld [vmem:[%s15] sm:$0x1]
        %v1289 = vld [vmem:[%s16] sm:$0x1]
        %v1290 = vsel %vm595, %v1286, 0.0
        %1291 = vadd.xlane.f32.xlu0 %v1290
        %v1292 = vpop.xlane.xlu0 %1291
        %v1293 = vsel %vm595, %v1287, 0.0
        %1294 = vadd.xlane.f32.xlu0 %v1293
        %v1295 = vpop.xlane.xlu0 %1294
        %v1296 = vmul.f32 %v1292, %v608
        %v1297 = vmul.f32 %v1295, %v608
        %v1298 = vsub.f32 %v1286, %v1296
        %v1299 = vsub.f32 %v1287, %v1297
        %v1300 = vmul.f32 %v1298, %v1298
        %v1301 = vmul.f32 %v1299, %v1299
        %v1302 = vsel %vm595, %v1300, 0.0
        %1303 = vadd.xlane.f32.xlu0 %v1302
        %v1304 = vpop.xlane.xlu0 %1303
        %v1305 = vsel %vm595, %v1301, 0.0
        %1306 = vadd.xlane.f32.xlu0 %v1305
        %v1307 = vpop.xlane.xlu0 %1306
        %v1308 = vmul.f32 %v1304, %v608
        %v1309 = vmul.f32 %v1307, %v608
        %v1310 = vadd.f32 %v1308, 1e-05
        %v1311 = vadd.f32 %v1309, 1e-05
        %v1312 = vrsqrt.pop %v1310
        %v1313 = vmul.f32 %v1312, %v1310
        %v1314 = vmul.f32 %v1313, %v1312
        %v1315 = vmul.f32 0.5, %v1314
        %v1316 = vsub.f32 1.5, %v1315
        %v1317 = vmul.f32 %v1312, %v1316
        %vm1318 = vweird.f32 %v1310
        %vm1319 = vweird.f32 %v1312
        %vm1320 = vmor %vm1318, %vm1319
        %v1321 = vsel %vm1320, %v1312, %v1317
        %v1322 = vrsqrt.pop %v1311
        %v1323 = vmul.f32 %v1322, %v1311
        %v1324 = vmul.f32 %v1323, %v1322
        %v1325 = vmul.f32 0.5, %v1324
        %v1326 = vsub.f32 1.5, %v1325
        %v1327 = vmul.f32 %v1322, %v1326
        %vm1328 = vweird.f32 %v1311
        %vm1329 = vweird.f32 %v1322
        %vm1330 = vmor %vm1328, %vm1329
        %v1331 = vsel %vm1330, %v1322, %v1327
        %v1332 = vmul.f32 %v1298, %v1321
        %v1333 = vmul.f32 %v1299, %v1331
        %v1335 = vperm.slane %v1288, 0
        %v1337 = vmul.f32 %v1332, %v1335
        %v1338 = vmul.f32 %v1333, %v1335
        %v1340 = vperm.slane %v1289, 0
        %v1342 = vadd.f32 %v1337, %v1340
        %v1343 = vadd.f32 %v1338, %v1340
        %s1344 = sld [smem:[#allocation3 + %s30]]
        %v1345 = vstv %s1344
        %vm1346 = vcmp.eq.s32.totalorder %v696, %v1345
        %vm1347 = vcmp.eq.s32.totalorder %v697, %v1345
        %v1348 = vsel %vm1346, 1, 0
        %v1349 = vsel %vm1347, 1, 0
        %v1350 = vcvt.s32.f32 %v1348
        %v1351 = vcvt.s32.f32 %v1349
        %v1352 = vmul.f32 %v1342, %v1350
        %v1353 = vmul.f32 %v1343, %v1351
        %v1354 = vsel %vm595, %v1352, 0.0
        %v1355 = vsel %vm595, %v1353, 0.0
        %v1356 = vadd.f32 %v1354, %v1355
        %v1357 = vrot.slane %v1356, 4
        %v1358 = vadd.f32 %v1356, %v1357
        %v1359 = vrot.slane %v1358, 2
        %v1360 = vadd.f32 %v1358, %v1359
        %v1361 = vrot.slane %v1360, 1
        %v1362 = vadd.f32 %v1360, %v1361
        %v1363 = vld [vmem:[%s17] sm:$0xf]
        %v1364 = vld [vmem:[%s17 + $0x4] sm:$0xf]
        %v1365 = vld [vmem:[%s17 + $0x8] sm:$0xf]
        %v1366 = vld [vmem:[%s17 + $0xc] sm:$0xf]
        %v1367 = vpack.c.bf16 %v1362, %v1362
        %v1372 = vunpack.c.l.b16 %v1363
        %v1373 = vunpack.c.l.b16 %v1364
        %v1374 = vunpack.c.l.b16 %v1365
        %v1375 = vunpack.c.l.b16 %v1366
        %v1376 = vpack.c.b16 %v1373, %v1372
        %v1377 = vpack.c.b16 %v1375, %v1374
        %v1381 = vsel %vm595, %v1367, 0
        %1383 = vmatpush.bf16.msra.mxu0 0
        %1384 = vmatpush.bf16.msra.mxu0 0
        %1385 = vmatpush.bf16.msra.mxu0 0
        %1386 = vmatpush.bf16.msra.mxu0 0
        %1387 = vmatpush.bf16.msra.mxu0 0
        %1388 = vmatpush.bf16.msra.mxu0 0
        %1389 = vmatpush.bf16.msra.mxu0 %v1377
        %1390 = vmatpush.bf16.msra.mxu0 %v1376
        %1391 = vmatmul.bf16.gmra.mxu0 %v1381
        %v1392 = vpop.f32.mrf.mxu0
        %v1393 = vadd.f32 0.0, %v1392
        %v1394 = vpop.f32.mrf.mxu0
        %1395 = vdwg.mxu0
        %vm1396 = vcmask 253952
        %1397 = vst.msk [vmem:[%s585] sm:$0x1] %vm1396, %v1393
        %p1398 = scmp.lt.s32.totalorder %s30, 3
        %s1399 = scalar_select %p1398, %s30, 3
        %s1400 = scalar_lea.vmem %s18, %s1399
        // Predicated region
        $region97: #{_lambda_.4} parent=91 // pred_check
          %p1401 = pneg %p431
        $region98: #{_lambda_.4} parent=91 // pred_check_branch
          %1403 = sbr.rel (%p1401) target = $region100
        $region99: #{_lambda_.4} parent=91 // pred_region
          _
        $region100: #{_lambda_.4} parent=91 // pred_fallthru
          _
      $region92: #{_lambda_.4} parent=5 // pred_fallthru
        _
      %p1404 = scmp.le.s32.totalorder 2, %s25
      // Predicated region
      $region101: #{_lambda_.4} parent=5 // pred_check
        %p1405 = pneg %p1404
      $region102: #{_lambda_.4} parent=5 // pred_check_branch
        %1407 = sbr.rel (%p1405) target = $region104
      $region103: #{_lambda_.4} parent=5 // pred_region
        %s1408 = ssub.s32 %s25, 2
        // Predicated region
        $region105: #{_lambda_.4} parent=103 // pred_check
          %p1409 = pneg %p437
        $region106: #{_lambda_.4} parent=103 // pred_check_branch
          %1411 = sbr.rel (%p1409) target = $region108
        $region107: #{_lambda_.4} parent=103 // pred_region
          %p1412 = scmp.lt.s32.totalorder %s31, 3
          %s1413 = scalar_select %p1412, %s31, 3
          %s1414 = scalar_lea.vmem %s18, %s1413
        $region108: #{_lambda_.4} parent=103 // pred_fallthru
          _
      $region104: #{_lambda_.4} parent=5 // pred_fallthru
        _
    $region6: #{_lambda_.4} parent=1 // loop_footer
      %s29 = sadd.s32 1, %s25
    $region7: #{_lambda_.4} parent=1 // loop_footer_branch
      %24 = sbr.rel target = $region3
    $region8: #{_lambda_.4} parent=1 // loop_exit
      _
    %1415 = vsyncpa [#allocation4], 1
    %s1416 = scalar_lea.sflag [#allocation4], 1
    %1417 = vsyncpa %s1416, 1

</llo_original>
